<compile_context>
chip_gen: v6e
topology: v6e:2x2x1
jax: 0.10.0
libtpu: 0.0.40
codegen_flags: <defaults>
</compile_context>

<pallas_src>
import functools

import jax
import jax.numpy as jnp
from jax.experimental import pallas as pl
from jax.experimental.pallas import tpu as pltpu


def classifier_kernel(x_ref, w1_ref, b1_ref, w2_ref, b2_ref, out_ref, acc_ref,
                      *, nclass):
    j = pl.program_id(0)

    @pl.when(j == 0)
    def _():
        acc_ref[...] = jnp.zeros_like(acc_ref)

    # fc1 tile: (B, F) @ (F, tH) -> (B, tH), f32 accumulation on the MXU.
    h = jnp.dot(x_ref[...], w1_ref[...], preferred_element_type=jnp.float32)
    h = jnp.maximum(h + b1_ref[...], 0.0)          # bias + ReLU per hidden tile

    # fc2 partial: (B, tH) @ (tH, Cp) -> (B, Cp), accumulated across hidden tiles.
    acc_ref[...] += jnp.dot(h.astype(w2_ref.dtype), w2_ref[...],
                            preferred_element_type=jnp.float32)

    @pl.when(j == pl.num_programs(0) - 1)
    def _():
        logits = acc_ref[...] + b2_ref[...]
        # sigmoid (EUP exp + approx reciprocal on the EUP slot)
        s = pl.reciprocal(1.0 + jnp.exp(-logits), approx=True)
        # softmax over the class dim; sigmoid output is in (0,1) so no max shift
        # needed. Mask the padded class lanes out of the normalization.
        col = jax.lax.broadcasted_iota(jnp.int32, s.shape, 1)
        e = jnp.where(col < nclass, jnp.exp(s), 0.0)
        denom = jnp.sum(e, axis=-1, keepdims=True)
        out_ref[...] = e * pl.reciprocal(denom, approx=True)


def classifier_forward(x, w1, b1, w2, b2, *, tile_h=256):
    B, F = x.shape
    H = w1.shape[1]
    C = w2.shape[1]
    Cp = ((C + 127) // 128) * 128            # lane-dense class dim
    if H % tile_h != 0:
        tile_h = H                           # fall back to a single hidden tile

    # Cast the heavy operands to bf16 (weight streaming is the bottleneck);
    # pad W2/b2/out along the class dim. All pure glue outside the kernel.
    x_bf = x.astype(jnp.bfloat16)
    w1_bf = w1.astype(jnp.bfloat16)
    w2_p = jnp.zeros((H, Cp), jnp.bfloat16).at[:, :C].set(w2.astype(jnp.bfloat16))
    b2_p = jnp.zeros((1, Cp), jnp.float32).at[:, :C].set(b2.astype(jnp.float32))

    grid = (H // tile_h,)
    kernel = functools.partial(classifier_kernel, nclass=C)

    out_p = pl.pallas_call(
        kernel,
        out_shape=jax.ShapeDtypeStruct((B, Cp), jnp.float32),
        grid_spec=pltpu.PrefetchScalarGridSpec(
            num_scalar_prefetch=0,
            grid=grid,
            in_specs=[
                pl.BlockSpec((B, F), lambda j: (0, 0)),        # x: VMEM resident
                pl.BlockSpec((F, tile_h), lambda j: (0, j)),   # W1: streamed over H
                pl.BlockSpec((1, tile_h), lambda j: (0, j)),   # b1: tiled with W1
                pl.BlockSpec((tile_h, Cp), lambda j: (j, 0)),  # W2: streamed over H
                pl.BlockSpec((1, Cp), lambda j: (0, 0)),       # b2: resident
            ],
            out_specs=pl.BlockSpec((B, Cp), lambda j: (0, 0)), # resident output
            scratch_shapes=[pltpu.VMEM((B, Cp), jnp.float32)], # fc2 logit accumulator
        ),
        compiler_params=pltpu.CompilerParams(
            dimension_semantics=("arbitrary",),   # reduction over hidden tiles
            vmem_limit_bytes=32 << 20,            # safe on v7x (64 MiB physical)
        ),
    )(x_bf, w1_bf, b1.astype(jnp.float32), w2_p, b2_p)

    return out_p[:, :C]


def reference_forward(x, w1, b1, w2, b2):
    # Reference with the same bf16 cast applied to the heavy operands, so the
    # comparison isolates kernel-internal error (approx reciprocal, bf16 h).
    xr = x.astype(jnp.bfloat16).astype(jnp.float32)
    w1r = w1.astype(jnp.bfloat16).astype(jnp.float32)
    w2r = w2.astype(jnp.bfloat16).astype(jnp.float32)
    h = jnp.maximum(xr @ w1r + b1, 0.0)
    s = jax.nn.sigmoid(h @ w2r + b2)
    return jax.nn.softmax(s, axis=1)


if __name__ == "__main__":
    # Shapes implied by Classifier(feature_size=2048, nclass=10)
    B, F, H, C = 4, 2048, 1024, 10

    key = jax.random.PRNGKey(0)
    k1, k2, k3, k4, kx = jax.random.split(key, 5)

    # Deterministic synthetic parameters (uniform, PyTorch-like init scale).
    w1 = jax.random.uniform(k1, (F, H), jnp.float32, -1.0, 1.0) / jnp.sqrt(F)
    b1 = jax.random.uniform(k2, (1, H), jnp.float32, -1.0, 1.0) / jnp.sqrt(F)
    w2 = jax.random.uniform(k3, (H, C), jnp.float32, -1.0, 1.0) / jnp.sqrt(H)
    b2 = jax.random.uniform(k4, (1, C), jnp.float32, -1.0, 1.0) / jnp.sqrt(H)

    x = jax.random.normal(kx, (B, F), jnp.float32)

    out = jax.block_until_ready(classifier_forward(x, w1, b1, w2, b2))

    ref = reference_forward(x, w1, b1, w2, b2)
    assert out.shape == (B, C)
    assert jnp.allclose(out, ref, atol=2e-2, rtol=2e-2)
    assert jnp.allclose(jnp.sum(out, axis=1), jnp.ones((B,)), atol=1e-2)

    print("KERNEL_OK")
</pallas_src>

<mosaic_0001>
module attributes {stable_mosaic.version = 11 : i64} {
  func.func @classifier_kernel(%arg0: i32, %arg1: memref<4x2048xbf16, #tpu.memory_space<vmem>>, %arg2: memref<2048x256xbf16, #tpu.memory_space<vmem>>, %arg3: memref<1x256xf32, #tpu.memory_space<vmem>>, %arg4: memref<256x128xbf16, #tpu.memory_space<vmem>>, %arg5: memref<1x128xf32, #tpu.memory_space<vmem>>, %arg6: memref<4x128xf32, #tpu.memory_space<vmem>>, %arg7: memref<4x128xf32, #tpu.memory_space<vmem>>) attributes {dimension_semantics = [#tpu.dimension_semantics<arbitrary>], iteration_bounds = array<i64: 4>, scalar_prefetch = 0 : i64, scratch_operands = 1 : i64, tpu.core_type = #tpu.core_type<tc>, window_params = [{pipeline_mode = #tpu.pipeline_mode<synchronous>, transform_indices = @transform_0, window_bounds = array<i64: 4, 2048>}, {transform_indices = @transform_1, window_bounds = array<i64: 2048, 256>}, {transform_indices = @transform_2, window_bounds = array<i64: 1, 256>}, {transform_indices = @transform_3, window_bounds = array<i64: 256, 128>}, {pipeline_mode = #tpu.pipeline_mode<synchronous>, transform_indices = @transform_4, window_bounds = array<i64: 1, 128>}, {pipeline_mode = #tpu.pipeline_mode<synchronous>, transform_indices = @transform_5, window_bounds = array<i64: 4, 128>}]} {
    %c0_i32 = arith.constant 0 : i32
    %0 = arith.cmpi eq, %arg0, %c0_i32 : i32
    %1 = arith.extui %0 : i1 to i32
    %c0_i32_0 = arith.constant 0 : i32
    %2 = arith.cmpi ne, %1, %c0_i32_0 : i32
    scf.if %2 {
      %cst_15 = arith.constant 0.000000e+00 : f32
      %20 = vector.broadcast %cst_15 : f32 to vector<4x128xf32>
      %c0_16 = arith.constant 0 : index
      %c0_17 = arith.constant 0 : index
      %21 = vector.load %arg7[%c0_16, %c0_17] : memref<4x128xf32, #tpu.memory_space<vmem>>, vector<4x128xf32>
      tpu.vector_store %arg7[%c0_16, %c0_17], %20 {strides = array<i32>} : memref<4x128xf32, #tpu.memory_space<vmem>>, vector<4x128xf32>,
    } else {
    }
    %c0 = arith.constant 0 : index
    %c0_1 = arith.constant 0 : index
    %3 = vector.load %arg1[%c0, %c0_1] : memref<4x2048xbf16, #tpu.memory_space<vmem>>, vector<4x2048xbf16>
    %c0_2 = arith.constant 0 : index
    %c0_3 = arith.constant 0 : index
    %4 = vector.load %arg2[%c0_2, %c0_3] : memref<2048x256xbf16, #tpu.memory_space<vmem>>, vector<2048x256xbf16>
    %cst = arith.constant dense<0.000000e+00> : vector<4x256xf32>
    %5 = tpu.matmul %3, %4, %cst {dimension_numbers = #tpu.dot_dimension_numbers<[1], [0], [0], [1], [0, 0, 1, 1], [], []>} : vector<4x2048xbf16>, vector<2048x256xbf16>, vector<4x256xf32> -> vector<4x256xf32>
    %c0_4 = arith.constant 0 : index
    %c0_5 = arith.constant 0 : index
    %6 = vector.load %arg3[%c0_4, %c0_5] : memref<1x256xf32, #tpu.memory_space<vmem>>, vector<1x256xf32>
    %7 = vector.broadcast %6 : vector<1x256xf32> to vector<4x256xf32>
    %8 = arith.addf %5, %7 : vector<4x256xf32>
    %cst_6 = arith.constant 0.000000e+00 : f32
    %9 = vector.broadcast %cst_6 : f32 to vector<4x256xf32>
    %10 = arith.maximumf %8, %9 : vector<4x256xf32>
    %c0_7 = arith.constant 0 : index
    %c0_8 = arith.constant 0 : index
    %11 = vector.load %arg7[%c0_7, %c0_8] : memref<4x128xf32, #tpu.memory_space<vmem>>, vector<4x128xf32>
    %12 = arith.truncf %10 : vector<4x256xf32> to vector<4x256xbf16>
    %c0_9 = arith.constant 0 : index
    %c0_10 = arith.constant 0 : index
    %13 = vector.load %arg4[%c0_9, %c0_10] : memref<256x128xbf16, #tpu.memory_space<vmem>>, vector<256x128xbf16>
    %cst_11 = arith.constant dense<0.000000e+00> : vector<4x128xf32>
    %14 = tpu.matmul %12, %13, %cst_11 {dimension_numbers = #tpu.dot_dimension_numbers<[1], [0], [0], [1], [0, 0, 1, 1], [], []>} : vector<4x256xbf16>, vector<256x128xbf16>, vector<4x128xf32> -> vector<4x128xf32>
    %15 = arith.addf %11, %14 : vector<4x128xf32>
    %c0_12 = arith.constant 0 : index
    %c0_13 = arith.constant 0 : index
    %16 = vector.load %arg7[%c0_12, %c0_13] : memref<4x128xf32, #tpu.memory_space<vmem>>, vector<4x128xf32>
    tpu.vector_store %arg7[%c0_12, %c0_13], %15 {strides = array<i32>} : memref<4x128xf32, #tpu.memory_space<vmem>>, vector<4x128xf32>,
    %c3_i32 = arith.constant 3 : i32
    %17 = arith.cmpi eq, %arg0, %c3_i32 : i32
    %18 = arith.extui %17 : i1 to i32
    %c0_i32_14 = arith.constant 0 : i32
    %19 = arith.cmpi ne, %18, %c0_i32_14 : i32
    scf.if %19 {
      %c0_15 = arith.constant 0 : index
      %c0_16 = arith.constant 0 : index
      %20 = vector.load %arg7[%c0_15, %c0_16] : memref<4x128xf32, #tpu.memory_space<vmem>>, vector<4x128xf32>
      %c0_17 = arith.constant 0 : index
      %c0_18 = arith.constant 0 : index
      %21 = vector.load %arg5[%c0_17, %c0_18] : memref<1x128xf32, #tpu.memory_space<vmem>>, vector<1x128xf32>
      %22 = vector.broadcast %21 : vector<1x128xf32> to vector<4x128xf32>
      %23 = arith.addf %20, %22 : vector<4x128xf32>
      %cst_19 = arith.constant 0.000000e+00 : f32
      %24 = vector.broadcast %cst_19 : f32 to vector<4x128xf32>
      %25 = arith.subf %24, %23 : vector<4x128xf32>
      %26 = math.exp %25 : vector<4x128xf32>
      %cst_20 = arith.constant 1.000000e+00 : f32
      %27 = vector.broadcast %cst_20 : f32 to vector<4x128xf32>
      %28 = arith.addf %27, %26 : vector<4x128xf32>
      %29 = tpu.reciprocal %28 {approx = true} : vector<4x128xf32> -> vector<4x128xf32>
      %30 = tpu.iota {dimensions = array<i32: 1>} : vector<4x128xi32>
      %c10_i32 = arith.constant 10 : i32
      %31 = vector.broadcast %c10_i32 : i32 to vector<4x128xi32>
      %32 = arith.cmpi slt, %30, %31 : vector<4x128xi32>
      %33 = math.exp %29 : vector<4x128xf32>
      %cst_21 = arith.constant 0.000000e+00 : f32
      %34 = vector.broadcast %cst_21 : f32 to vector<4x128xf32>
      %35 = arith.select %32, %33, %34 : vector<4x128xi1>, vector<4x128xf32>
      %cst_22 = arith.constant dense<0.000000e+00> : vector<4xf32>
      %36 = vector.multi_reduction <add>, %35, %cst_22 [1] : vector<4x128xf32> to vector<4xf32>
      %37 = vector.shape_cast %36 : vector<4xf32> to vector<4x1xf32>
      %38 = tpu.reciprocal %37 {approx = true} : vector<4x1xf32> -> vector<4x1xf32>
      %39 = vector.broadcast %38 : vector<4x1xf32> to vector<4x128xf32>
      %40 = arith.mulf %35, %39 : vector<4x128xf32>
      %c0_23 = arith.constant 0 : index
      %c0_24 = arith.constant 0 : index
      %41 = vector.load %arg6[%c0_23, %c0_24] : memref<4x128xf32, #tpu.memory_space<vmem>>, vector<4x128xf32>
      tpu.vector_store %arg6[%c0_23, %c0_24], %40 {strides = array<i32>} : memref<4x128xf32, #tpu.memory_space<vmem>>, vector<4x128xf32>,
    } else {
    }
    return
  }
  func.func @transform_0(%arg0: i32) -> (i32, i32) {
    %c0_i32 = arith.constant 0 : i32
    %c0_i32_0 = arith.constant 0 : i32
    %c0_i32_1 = arith.constant 0 : i32
    return %c0_i32, %c0_i32_0 : i32, i32
  }
  func.func @transform_1(%arg0: i32) -> (i32, i32) {
    %c0_i32 = arith.constant 0 : i32
    %c0_i32_0 = arith.constant 0 : i32
    return %c0_i32, %arg0 : i32, i32
  }
  func.func @transform_2(%arg0: i32) -> (i32, i32) {
    %c0_i32 = arith.constant 0 : i32
    %c0_i32_0 = arith.constant 0 : i32
    return %c0_i32, %arg0 : i32, i32
  }
  func.func @transform_3(%arg0: i32) -> (i32, i32) {
    %c0_i32 = arith.constant 0 : i32
    %c0_i32_0 = arith.constant 0 : i32
    return %arg0, %c0_i32 : i32, i32
  }
  func.func @transform_4(%arg0: i32) -> (i32, i32) {
    %c0_i32 = arith.constant 0 : i32
    %c0_i32_0 = arith.constant 0 : i32
    %c0_i32_1 = arith.constant 0 : i32
    return %c0_i32, %c0_i32_0 : i32, i32
  }
  func.func @transform_5(%arg0: i32) -> (i32, i32) {
    %c0_i32 = arith.constant 0 : i32
    %c0_i32_0 = arith.constant 0 : i32
    %c0_i32_1 = arith.constant 0 : i32
    return %c0_i32, %c0_i32_0 : i32, i32
  }
}

</mosaic_0001>

<llo_original>
// kernel: tpu_custom_call.1
$region0: #{tpu_custom_call.1}
  #allocation0 [shape = 'u32[]', space=smem, size = 0x4, offset = 0x4, fixed_abs, tag = 'smem constant byte address 0x4 - core index']
  #allocation1 [shape = 'u32[144,128]{1,0:T(1,128)}', space=vmem, size = 0x12000, scoped, tag = 'internal scratch']
  #allocation2 [shape = 'f32[4,128]{1,0:T(4,128)}', space=vmem, size = 0x800, scoped, tag = 'scratch operand']
  %s0 = inlined_call_operand.hbm [shape: bf16[4,2048], index: 0, kind: input, shape index: {}]
  %s1 = inlined_call_operand.hbm [shape: bf16[2048,1024], index: 1, kind: input, shape index: {}]
  %s2 = inlined_call_operand.hbm [shape: f32[1,1024], index: 2, kind: input, shape index: {}]
  %s3 = inlined_call_operand.hbm [shape: bf16[1024,128], index: 3, kind: input, shape index: {}]
  %s4 = inlined_call_operand.hbm [shape: f32[1,128], index: 4, kind: input, shape index: {}]
  %s5 = inlined_call_operand.hbm [shape: f32[4,128], index: 5, kind: output, shape index: {}]
  %s6 = sld [smem:[#allocation0]]
  $region81: #{tpu_custom_call.1} parent=0
    _
  %s8 = ssub.s32 1, %s6
  %s9 = scalar_select 0, %s8, %s6
  $region1: #{tpu_custom_call.1} parent=0
    #allocation3 [shape = 'u8[16384]{0}', space=vmem, size = 0x4000, scoped, tag = 'input window, operand 0, single buffered']
    #allocation4 [shape = 's32[2]{0}', space=sflag, size = 0x8, scoped, tag = 'scoped memory for tpu_custom_call.1']
    #allocation5 [shape = 's32[2]{0}', space=sflag, size = 0x8, scoped, tag = 'scoped memory for tpu_custom_call.1']
    #allocation6 [shape = 'u8[2097152]{0}', space=vmem, size = 0x200000, scoped, tag = 'input window, operand 1']
    #allocation7 [shape = 's32[2]{0}', space=sflag, size = 0x8, scoped, tag = 'scoped memory for tpu_custom_call.1']
    #allocation8 [shape = 'u8[2048]{0}', space=vmem, size = 0x800, scoped, tag = 'input window, operand 2']
    #allocation9 [shape = 'u8[131072]{0}', space=vmem, size = 0x20000, scoped, tag = 'input window, operand 3']
    #allocation10 [shape = 's32[2]{0}', space=sflag, size = 0x8, scoped, tag = 'scoped memory for tpu_custom_call.1']
    #allocation11 [shape = 'u8[512]{0}', space=vmem, size = 0x400, scoped, tag = 'input window, operand 4, single buffered']
    #allocation12 [shape = 'u8[2048]{0}', space=vmem, size = 0x800, scoped, tag = 'output window, operand 0, single buffered']
    %10 = vsyncpa [#allocation4], 0
    %11 = vsyncpa [#allocation7], 0
    %s12 = scalar_lea.sflag [#allocation7], 1
    %13 = vsyncpa %s12, 0
    %14 = vsyncpa [#allocation10], 0
    %s15 = scalar_lea.sflag [#allocation10], 1
    %16 = vsyncpa %s15, 0
    %17 = vsyncpa [#allocation5], 0
    loop: start=0, step=1, limit=6
    $region2: #{tpu_custom_call.1} parent=1 // loop_pre_header
      _
    $region3: #{tpu_custom_call.1} parent=1 // loop_header
      %s19 = sphi 0, %s23
      %p20 = scmp.ge.s32.totalorder %s19, 6
      %s27 = sphi 0, %s27
      %s29 = sphi 0, %s27
      %s30 = sphi 0, %s29
      %s44 = sphi 0, %s30
      %s50 = sphi 0, %s52
      %s53 = sphi 0, %s50
      %s54 = sphi 0, %s53
      %s70 = sphi 0, %s54
      %s76 = sphi 0, %s78
      %s79 = sphi 0, %s76
      %s80 = sphi 0, %s79
      %s96 = sphi 0, %s80
      %s102 = sphi 0, %s104
      %s105 = sphi 0, %s102
      %s106 = sphi 0, %s105
      %s122 = sphi 0, %s106
      %s126 = sphi 0, %s126
      %s128 = sphi 0, %s126
      %s129 = sphi 0, %s128
      %s143 = sphi 0, %s129
      %s147 = sphi 0, %s147
      %s149 = sphi 0, %s147
      %s150 = sphi 0, %s149
      %s164 = sphi 0, %s150
    $region4: #{tpu_custom_call.1} parent=1 // loop_header_branch
      %22 = sbr.rel (%p20) target = $region8
    $region5: #{tpu_custom_call.1} parent=1 // loop_body
      %s24 = ssub.s32 %s19, 1
      %s25 = ssub.s32 %s19, 2
      %s26 = sadd.s32 %s19, 1
      %s28 = sadd.s32 %s27, 1
      %p31 = scmp.eq.s32.totalorder %s19, 3
      %p32 = scmp.ne.s32.totalorder %s27, %s29
      %p33 = scmp.eq.s32.totalorder %s19, 0
      %p34 = por %p32, %p33
      %p35 = scmp.ne.s32.totalorder %s27, %s29
      %p36 = scmp.eq.s32.totalorder %s24, 3
      %p37 = por %p35, %p36
      %p38 = scmp.ne.s32.totalorder %s29, %s30
      %p39 = scmp.eq.s32.totalorder %s24, 0
      %p40 = por %p38, %p39
      %p41 = scmp.ne.s32.totalorder %s29, %s30
      %p42 = scmp.eq.s32.totalorder %s25, 3
      %p43 = por %p41, %p42
      %p45 = scmp.ne.s32.totalorder %s30, %s44
      %p46 = scmp.eq.s32.totalorder %s25, 0
      %p47 = por %p45, %p46
      %s48 = ssub.s32 %s19, %s26
      %p49 = scmp.eq.s32.totalorder %s48, 0
      %s51 = sadd.s32 %s50, 1
      %s52 = scalar_select %p49, %s50, %s51
      %p55 = pneg %p49
      %p56 = scmp.eq.s32.totalorder %s19, 3
      %p57 = por %p55, %p56
      %p58 = scmp.ne.s32.totalorder %s50, %s53
      %p59 = scmp.eq.s32.totalorder %s19, 0
      %p60 = por %p58, %p59
      %p61 = scmp.ne.s32.totalorder %s50, %s53
      %p62 = scmp.eq.s32.totalorder %s24, 3
      %p63 = por %p61, %p62
      %p64 = scmp.ne.s32.totalorder %s53, %s54
      %p65 = scmp.eq.s32.totalorder %s24, 0
      %p66 = por %p64, %p65
      %p67 = scmp.ne.s32.totalorder %s53, %s54
      %p68 = scmp.eq.s32.totalorder %s25, 3
      %p69 = por %p67, %p68
      %p71 = scmp.ne.s32.totalorder %s54, %s70
      %p72 = scmp.eq.s32.totalorder %s25, 0
      %p73 = por %p71, %p72
      %s74 = ssub.s32 %s19, %s26
      %p75 = scmp.eq.s32.totalorder %s74, 0
      %s77 = sadd.s32 %s76, 1
      %s78 = scalar_select %p75, %s76, %s77
      %p81 = pneg %p75
      %p82 = scmp.eq.s32.totalorder %s19, 3
      %p83 = por %p81, %p82
      %p84 = scmp.ne.s32.totalorder %s76, %s79
      %p85 = scmp.eq.s32.totalorder %s19, 0
      %p86 = por %p84, %p85
      %p87 = scmp.ne.s32.totalorder %s76, %s79
      %p88 = scmp.eq.s32.totalorder %s24, 3
      %p89 = por %p87, %p88
      %p90 = scmp.ne.s32.totalorder %s79, %s80
      %p91 = scmp.eq.s32.totalorder %s24, 0
      %p92 = por %p90, %p91
      %p93 = scmp.ne.s32.totalorder %s79, %s80
      %p94 = scmp.eq.s32.totalorder %s25, 3
      %p95 = por %p93, %p94
      %p97 = scmp.ne.s32.totalorder %s80, %s96
      %p98 = scmp.eq.s32.totalorder %s25, 0
      %p99 = por %p97, %p98
      %s100 = ssub.s32 %s19, %s26
      %p101 = scmp.eq.s32.totalorder %s100, 0
      %s103 = sadd.s32 %s102, 1
      %s104 = scalar_select %p101, %s102, %s103
      %p107 = pneg %p101
      %p108 = scmp.eq.s32.totalorder %s19, 3
      %p109 = por %p107, %p108
      %p110 = scmp.ne.s32.totalorder %s102, %s105
      %p111 = scmp.eq.s32.totalorder %s19, 0
      %p112 = por %p110, %p111
      %p113 = scmp.ne.s32.totalorder %s102, %s105
      %p114 = scmp.eq.s32.totalorder %s24, 3
      %p115 = por %p113, %p114
      %p116 = scmp.ne.s32.totalorder %s105, %s106
      %p117 = scmp.eq.s32.totalorder %s24, 0
      %p118 = por %p116, %p117
      %p119 = scmp.ne.s32.totalorder %s105, %s106
      %p120 = scmp.eq.s32.totalorder %s25, 3
      %p121 = por %p119, %p120
      %p123 = scmp.ne.s32.totalorder %s106, %s122
      %p124 = scmp.eq.s32.totalorder %s25, 0
      %p125 = por %p123, %p124
      %s127 = sadd.s32 %s126, 1
      %p130 = scmp.eq.s32.totalorder %s19, 3
      %p131 = scmp.ne.s32.totalorder %s126, %s128
      %p132 = scmp.eq.s32.totalorder %s19, 0
      %p133 = por %p131, %p132
      %p134 = scmp.ne.s32.totalorder %s126, %s128
      %p135 = scmp.eq.s32.totalorder %s24, 3
      %p136 = por %p134, %p135
      %p137 = scmp.ne.s32.totalorder %s128, %s129
      %p138 = scmp.eq.s32.totalorder %s24, 0
      %p139 = por %p137, %p138
      %p140 = scmp.ne.s32.totalorder %s128, %s129
      %p141 = scmp.eq.s32.totalorder %s25, 3
      %p142 = por %p140, %p141
      %p144 = scmp.ne.s32.totalorder %s129, %s143
      %p145 = scmp.eq.s32.totalorder %s25, 0
      %p146 = por %p144, %p145
      %s148 = sadd.s32 %s147, 1
      %p151 = scmp.eq.s32.totalorder %s19, 3
      %p152 = scmp.ne.s32.totalorder %s147, %s149
      %p153 = scmp.eq.s32.totalorder %s19, 0
      %p154 = por %p152, %p153
      %p155 = scmp.ne.s32.totalorder %s147, %s149
      %p156 = scmp.eq.s32.totalorder %s24, 3
      %p157 = por %p155, %p156
      %p158 = scmp.ne.s32.totalorder %s149, %s150
      %p159 = scmp.eq.s32.totalorder %s24, 0
      %p160 = por %p158, %p159
      %p161 = scmp.ne.s32.totalorder %s149, %s150
      %p162 = scmp.eq.s32.totalorder %s25, 3
      %p163 = por %p161, %p162
      %p165 = scmp.ne.s32.totalorder %s150, %s164
      %p166 = scmp.eq.s32.totalorder %s25, 0
      %p167 = por %p165, %p166
      %p168 = scmp.le.s32.totalorder 1, %s19
      %p169 = scmp.lt.s32.totalorder %s19, 5
      %p170 = pnand %p168, %p169
      %p171 = pneg %p170
      // Predicated region
      $region9: #{tpu_custom_call.1} parent=5 // pred_check
        _
      $region10: #{tpu_custom_call.1} parent=5 // pred_check_branch
        %173 = sbr.rel (%p170) target = $region12
      $region11: #{tpu_custom_call.1} parent=5 // pred_region
        %s174 = ssub.s32 %s19, 1
        // Predicated region
        $region13: #{tpu_custom_call.1} parent=11 // pred_check
          %p175 = pneg %p40
        $region14: #{tpu_custom_call.1} parent=11 // pred_check_branch
          %177 = sbr.rel (%p175) target = $region16
        $region15: #{tpu_custom_call.1} parent=11 // pred_region
          %s179 = ssub.s32 512, 512
          %180 = vsyncadd [#allocation4], %s179
          %s182 = sshll.u32 [#allocation3], 4
          %s183 = int_to_ptr.vmem [resolvable:$true] %s182
          %185 = dma.hbm_to_vmem [thread:$0]  %s0, 512, %s183, [#allocation4]
        $region16: #{tpu_custom_call.1} parent=11 // pred_fallthru
          _
        // Predicated region
        $region17: #{tpu_custom_call.1} parent=11 // pred_check
          %p186 = pneg %p139
        $region18: #{tpu_custom_call.1} parent=11 // pred_check_branch
          %188 = sbr.rel (%p186) target = $region20
        $region19: #{tpu_custom_call.1} parent=11 // pred_region
          %s190 = ssub.s32 16, 16
          %191 = vsyncadd [#allocation10], %s190
          %s193 = sshll.u32 [#allocation11], 4
          %s194 = int_to_ptr.vmem [resolvable:$true] %s193
          %196 = dma.hbm_to_vmem [thread:$0]  %s4, 16, %s194, [#allocation10]
        $region20: #{tpu_custom_call.1} parent=11 // pred_fallthru
          _
      $region12: #{tpu_custom_call.1} parent=5 // pred_fallthru
        _
      %p197 = scmp.lt.s32.totalorder %s19, 4
      // Predicated region
      $region21: #{tpu_custom_call.1} parent=5 // pred_check
        %p198 = pneg %p197
      $region22: #{tpu_custom_call.1} parent=5 // pred_check_branch
        %200 = sbr.rel (%p198) target = $region24
      $region23: #{tpu_custom_call.1} parent=5 // pred_region
        // Predicated region
        $region25: #{tpu_custom_call.1} parent=23 // pred_check
          %p201 = pneg %p60
        $region26: #{tpu_custom_call.1} parent=23 // pred_check_branch
          %203 = sbr.rel (%p201) target = $region28
        $region27: #{tpu_custom_call.1} parent=23 // pred_region
          %s204 = sand.u32 %s19, 1
          %s205 = scalar_lea.sflag [#allocation7], %s204
          %s206 = sand.u32 %s50, 1
          %s207 = smul.addr %s206, 2048
          %s208 = scalar_lea.vmem [#allocation6], %s207
          %s209 = smul.u32 2, %s19
          %s211 = ssub.s32 32768, 32768
          %212 = vsyncadd %s205, %s211
          %s213 = smul.addr %s209, 64
          %s214 = scalar_lea.hbm %s1, %s213
          %s215 = sshll.u32 %s208, 4
          %s216 = int_to_ptr.vmem [resolvable:$true] %s215
          %221 = dma.hbm_to_vmem [thread:$0]  %s214, 32768, %s216, %s205, 512, 128, 8
        $region28: #{tpu_custom_call.1} parent=23 // pred_fallthru
          _
        // Predicated region
        $region29: #{tpu_custom_call.1} parent=23 // pred_check
          %p222 = pneg %p86
        $region30: #{tpu_custom_call.1} parent=23 // pred_check_branch
          %224 = sbr.rel (%p222) target = $region32
        $region31: #{tpu_custom_call.1} parent=23 // pred_region
          %s225 = sand.u32 %s19, 1
          %s226 = scalar_lea.sflag [#allocation7], %s225
          %s227 = sand.u32 %s76, 1
          %s228 = smul.addr %s227, 2
          %s229 = scalar_lea.vmem [#allocation8], %s228
          %s230 = smul.u32 2, %s19
          %s232 = ssub.s32 32, 32
          %233 = vsyncadd %s226, %s232
          %s234 = smul.addr %s230, 16
          %s235 = scalar_lea.hbm %s2, %s234
          %s237 = sshll.u32 %s229, 4
          %s238 = int_to_ptr.vmem [resolvable:$true] %s237
          %240 = dma.hbm_to_vmem [thread:$0]  %s235, 32, %s238, %s226
        $region32: #{tpu_custom_call.1} parent=23 // pred_fallthru
          _
        // Predicated region
        $region33: #{tpu_custom_call.1} parent=23 // pred_check
          %p241 = pneg %p112
        $region34: #{tpu_custom_call.1} parent=23 // pred_check_branch
          %243 = sbr.rel (%p241) target = $region36
        $region35: #{tpu_custom_call.1} parent=23 // pred_region
          %s244 = sand.u32 %s19, 1
          %s245 = scalar_lea.sflag [#allocation10], %s244
          %s246 = sand.u32 %s102, 1
          %s247 = smul.addr %s246, 128
          %s248 = scalar_lea.vmem [#allocation9], %s247
          %s249 = smul.u32 32, %s19
          %s251 = ssub.s32 2048, 2048
          %252 = vsyncadd %s245, %s251
          %s253 = smul.addr %s249, 64
          %s254 = scalar_lea.hbm %s3, %s253
          %s255 = sshll.u32 %s248, 4
          %s256 = int_to_ptr.vmem [resolvable:$true] %s255
          %261 = dma.hbm_to_vmem [thread:$0]  %s254, 2048, %s256, %s245, 64, 64, 4
        $region36: #{tpu_custom_call.1} parent=23 // pred_fallthru
          _
      $region24: #{tpu_custom_call.1} parent=5 // pred_fallthru
        _
      %p262 = scmp.le.s32.totalorder 1, %s19
      %p263 = scmp.lt.s32.totalorder %s19, 5
      %p264 = pnand %p262, %p263
      %p265 = pneg %p264
      // Predicated region
      $region37: #{tpu_custom_call.1} parent=5 // pred_check
        _
      $region38: #{tpu_custom_call.1} parent=5 // pred_check_branch
        %267 = sbr.rel (%p264) target = $region40
      $region39: #{tpu_custom_call.1} parent=5 // pred_region
        %s268 = ssub.s32 %s19, 1
        // Predicated region
        $region41: #{tpu_custom_call.1} parent=39 // pred_check
          %p269 = pneg %p40
        $region42: #{tpu_custom_call.1} parent=39 // pred_check_branch
          %271 = sbr.rel (%p269) target = $region44
        $region43: #{tpu_custom_call.1} parent=39 // pred_region
          %272 = dma.done [#allocation4], 512
        $region44: #{tpu_custom_call.1} parent=39 // pred_fallthru
          _
        %s273 = sand.u32 %s24, 1
        %s274 = scalar_lea.sflag [#allocation7], %s273
        %s275 = sand.u32 %s53, 1
        %s276 = smul.addr %s275, 2048
        %s277 = scalar_lea.vmem [#allocation6], %s276
        // Predicated region
        $region45: #{tpu_custom_call.1} parent=39 // pred_check
          %p278 = pneg %p66
        $region46: #{tpu_custom_call.1} parent=39 // pred_check_branch
          %280 = sbr.rel (%p278) target = $region48
        $region47: #{tpu_custom_call.1} parent=39 // pred_region
          %281 = dma.done %s274, 32768
        $region48: #{tpu_custom_call.1} parent=39 // pred_fallthru
          _
        %s282 = sand.u32 %s24, 1
        %s283 = scalar_lea.sflag [#allocation7], %s282
        %s284 = sand.u32 %s79, 1
        %s285 = smul.addr %s284, 2
        %s286 = scalar_lea.vmem [#allocation8], %s285
        // Predicated region
        $region49: #{tpu_custom_call.1} parent=39 // pred_check
          %p287 = pneg %p92
        $region50: #{tpu_custom_call.1} parent=39 // pred_check_branch
          %289 = sbr.rel (%p287) target = $region52
        $region51: #{tpu_custom_call.1} parent=39 // pred_region
          %290 = dma.done %s283, 32
        $region52: #{tpu_custom_call.1} parent=39 // pred_fallthru
          _
        %s291 = sand.u32 %s24, 1
        %s292 = scalar_lea.sflag [#allocation10], %s291
        %s293 = sand.u32 %s105, 1
        %s294 = smul.addr %s293, 128
        %s295 = scalar_lea.vmem [#allocation9], %s294
        // Predicated region
        $region53: #{tpu_custom_call.1} parent=39 // pred_check
          %p296 = pneg %p118
        $region54: #{tpu_custom_call.1} parent=39 // pred_check_branch
          %298 = sbr.rel (%p296) target = $region56
        $region55: #{tpu_custom_call.1} parent=39 // pred_region
          %299 = dma.done %s292, 2048
        $region56: #{tpu_custom_call.1} parent=39 // pred_fallthru
          _
        // Predicated region
        $region57: #{tpu_custom_call.1} parent=39 // pred_check
          %p300 = pneg %p139
        $region58: #{tpu_custom_call.1} parent=39 // pred_check_branch
          %302 = sbr.rel (%p300) target = $region60
        $region59: #{tpu_custom_call.1} parent=39 // pred_region
          %303 = dma.done [#allocation10], 16
        $region60: #{tpu_custom_call.1} parent=39 // pred_fallthru
          _
        %p304 = pneg %p40
        %p305 = pneg %p37
        %s306 = sand.u32 %s24, 1
        %s307 = scalar_lea.sflag [#allocation7], %s306
        %s308 = sand.u32 %s53, 1
        %s309 = smul.addr %s308, 2048
        %s310 = scalar_lea.vmem [#allocation6], %s309
        %p311 = pneg %p66
        %p312 = pneg %p63
        %s313 = sand.u32 %s24, 1
        %s314 = scalar_lea.sflag [#allocation7], %s313
        %s315 = sand.u32 %s79, 1
        %s316 = smul.addr %s315, 2
        %s317 = scalar_lea.vmem [#allocation8], %s316
        %p318 = pneg %p92
        %p319 = pneg %p89
        %s320 = sand.u32 %s24, 1
        %s321 = scalar_lea.sflag [#allocation10], %s320
        %s322 = sand.u32 %s105, 1
        %s323 = smul.addr %s322, 128
        %s324 = scalar_lea.vmem [#allocation9], %s323
        %p325 = pneg %p118
        %p326 = pneg %p115
        %p327 = pneg %p139
        %p328 = pneg %p136
        %p329 = pneg %p160
        %p330 = pneg %p157
        %s331 = smul.u32 2, %s24
        %s332 = smul.u32 2, %s24
        %s333 = smul.u32 32, %s24
        %p335 = scmp.eq.s32.totalorder %s24, 0
        // Predicated region
        $region61: #{tpu_custom_call.1} parent=39 // pred_check
          %p336 = pneg %p335
        $region62: #{tpu_custom_call.1} parent=39 // pred_check_branch
          %338 = sbr.rel (%p336) target = $region64
        $region63: #{tpu_custom_call.1} parent=39 // pred_region
          %339 = vst [vmem:[#allocation2] sm:$0xf] 0.0
        $region64: #{tpu_custom_call.1} parent=39 // pred_fallthru
          _
        %v340 = vld [vmem:[#allocation3] sm:$0xff]
        %v341 = vld [vmem:[#allocation3 + $0x8] sm:$0xff]
        %v342 = vld [vmem:[#allocation3 + $0x10] sm:$0xff]
        %v343 = vld [vmem:[#allocation3 + $0x18] sm:$0xff]
        %v344 = vld [vmem:[%s277] sm:$0xff]
        %v345 = vld [vmem:[%s277 + $0x8] sm:$0xff]
        %v346 = vld [vmem:[%s277 + $0x10] sm:$0xff]
        %v347 = vld [vmem:[%s277 + $0x18] sm:$0xff]
        %v348 = vld [vmem:[%s277 + $0x20] sm:$0xff]
        %v349 = vld [vmem:[%s277 + $0x28] sm:$0xff]
        %v350 = vld [vmem:[%s277 + $0x30] sm:$0xff]
        %v351 = vld [vmem:[%s277 + $0x38] sm:$0xff]
        %v352 = vld [vmem:[%s277 + $0x40] sm:$0xff]
        %v353 = vld [vmem:[%s277 + $0x48] sm:$0xff]
        %v354 = vld [vmem:[%s277 + $0x50] sm:$0xff]
        %v355 = vld [vmem:[%s277 + $0x58] sm:$0xff]
        %v356 = vld [vmem:[%s277 + $0x60] sm:$0xff]
        %v357 = vld [vmem:[%s277 + $0x68] sm:$0xff]
        %v358 = vld [vmem:[%s277 + $0x70] sm:$0xff]
        %v359 = vld [vmem:[%s277 + $0x78] sm:$0xff]
        %v360 = vld [vmem:[%s277 + $0x80] sm:$0xff]
        %v361 = vld [vmem:[%s277 + $0x88] sm:$0xff]
        %v362 = vld [vmem:[%s277 + $0x90] sm:$0xff]
        %v363 = vld [vmem:[%s277 + $0x98] sm:$0xff]
        %v364 = vld [vmem:[%s277 + $0xa0] sm:$0xff]
        %v365 = vld [vmem:[%s277 + $0xa8] sm:$0xff]
        %v366 = vld [vmem:[%s277 + $0xb0] sm:$0xff]
        %v367 = vld [vmem:[%s277 + $0xb8] sm:$0xff]
        %v368 = vld [vmem:[%s277 + $0xc0] sm:$0xff]
        %v369 = vld [vmem:[%s277 + $0xc8] sm:$0xff]
        %v370 = vld [vmem:[%s277 + $0xd0] sm:$0xff]
        %v371 = vld [vmem:[%s277 + $0xd8] sm:$0xff]
        %v372 = vld [vmem:[%s277 + $0xe0] sm:$0xff]
        %v373 = vld [vmem:[%s277 + $0xe8] sm:$0xff]
        %v374 = vld [vmem:[%s277 + $0xf0] sm:$0xff]
        %v375 = vld [vmem:[%s277 + $0xf8] sm:$0xff]
        %v376 = vld [vmem:[%s277 + $0x100] sm:$0xff]
        %v377 = vld [vmem:[%s277 + $0x108] sm:$0xff]
        %v378 = vld [vmem:[%s277 + $0x110] sm:$0xff]
        %v379 = vld [vmem:[%s277 + $0x118] sm:$0xff]
        %v380 = vld [vmem:[%s277 + $0x120] sm:$0xff]
        %v381 = vld [vmem:[%s277 + $0x128] sm:$0xff]
        %v382 = vld [vmem:[%s277 + $0x130] sm:$0xff]
        %v383 = vld [vmem:[%s277 + $0x138] sm:$0xff]
        %v384 = vld [vmem:[%s277 + $0x140] sm:$0xff]
        %v385 = vld [vmem:[%s277 + $0x148] sm:$0xff]
        %v386 = vld [vmem:[%s277 + $0x150] sm:$0xff]
        %v387 = vld [vmem:[%s277 + $0x158] sm:$0xff]
        %v388 = vld [vmem:[%s277 + $0x160] sm:$0xff]
        %v389 = vld [vmem:[%s277 + $0x168] sm:$0xff]
        %v390 = vld [vmem:[%s277 + $0x170] sm:$0xff]
        %v391 = vld [vmem:[%s277 + $0x178] sm:$0xff]
        %v392 = vld [vmem:[%s277 + $0x180] sm:$0xff]
        %v393 = vld [vmem:[%s277 + $0x188] sm:$0xff]
        %v394 = vld [vmem:[%s277 + $0x190] sm:$0xff]
        %v395 = vld [vmem:[%s277 + $0x198] sm:$0xff]
        %v396 = vld [vmem:[%s277 + $0x1a0] sm:$0xff]
        %v397 = vld [vmem:[%s277 + $0x1a8] sm:$0xff]
        %v398 = vld [vmem:[%s277 + $0x1b0] sm:$0xff]
        %v399 = vld [vmem:[%s277 + $0x1b8] sm:$0xff]
        %v400 = vld [vmem:[%s277 + $0x1c0] sm:$0xff]
        %v401 = vld [vmem:[%s277 + $0x1c8] sm:$0xff]
        %v402 = vld [vmem:[%s277 + $0x1d0] sm:$0xff]
        %v403 = vld [vmem:[%s277 + $0x1d8] sm:$0xff]
        %v404 = vld [vmem:[%s277 + $0x1e0] sm:$0xff]
        %v405 = vld [vmem:[%s277 + $0x1e8] sm:$0xff]
        %v406 = vld [vmem:[%s277 + $0x1f0] sm:$0xff]
        %v407 = vld [vmem:[%s277 + $0x1f8] sm:$0xff]
        %v408 = vld [vmem:[%s277 + $0x200] sm:$0xff]
        %v409 = vld [vmem:[%s277 + $0x208] sm:$0xff]
        %v410 = vld [vmem:[%s277 + $0x210] sm:$0xff]
        %v411 = vld [vmem:[%s277 + $0x218] sm:$0xff]
        %v412 = vld [vmem:[%s277 + $0x220] sm:$0xff]
        %v413 = vld [vmem:[%s277 + $0x228] sm:$0xff]
        %v414 = vld [vmem:[%s277 + $0x230] sm:$0xff]
        %v415 = vld [vmem:[%s277 + $0x238] sm:$0xff]
        %v416 = vld [vmem:[%s277 + $0x240] sm:$0xff]
        %v417 = vld [vmem:[%s277 + $0x248] sm:$0xff]
        %v418 = vld [vmem:[%s277 + $0x250] sm:$0xff]
        %v419 = vld [vmem:[%s277 + $0x258] sm:$0xff]
        %v420 = vld [vmem:[%s277 + $0x260] sm:$0xff]
        %v421 = vld [vmem:[%s277 + $0x268] sm:$0xff]
        %v422 = vld [vmem:[%s277 + $0x270] sm:$0xff]
        %v423 = vld [vmem:[%s277 + $0x278] sm:$0xff]
        %v424 = vld [vmem:[%s277 + $0x280] sm:$0xff]
        %v425 = vld [vmem:[%s277 + $0x288] sm:$0xff]
        %v426 = vld [vmem:[%s277 + $0x290] sm:$0xff]
        %v427 = vld [vmem:[%s277 + $0x298] sm:$0xff]
        %v428 = vld [vmem:[%s277 + $0x2a0] sm:$0xff]
        %v429 = vld [vmem:[%s277 + $0x2a8] sm:$0xff]
        %v430 = vld [vmem:[%s277 + $0x2b0] sm:$0xff]
        %v431 = vld [vmem:[%s277 + $0x2b8] sm:$0xff]
        %v432 = vld [vmem:[%s277 + $0x2c0] sm:$0xff]
        %v433 = vld [vmem:[%s277 + $0x2c8] sm:$0xff]
        %v434 = vld [vmem:[%s277 + $0x2d0] sm:$0xff]
        %v435 = vld [vmem:[%s277 + $0x2d8] sm:$0xff]
        %v436 = vld [vmem:[%s277 + $0x2e0] sm:$0xff]
        %v437 = vld [vmem:[%s277 + $0x2e8] sm:$0xff]
        %v438 = vld [vmem:[%s277 + $0x2f0] sm:$0xff]
        %v439 = vld [vmem:[%s277 + $0x2f8] sm:$0xff]
        %v440 = vld [vmem:[%s277 + $0x300] sm:$0xff]
        %v441 = vld [vmem:[%s277 + $0x308] sm:$0xff]
        %v442 = vld [vmem:[%s277 + $0x310] sm:$0xff]
        %v443 = vld [vmem:[%s277 + $0x318] sm:$0xff]
        %v444 = vld [vmem:[%s277 + $0x320] sm:$0xff]
        %v445 = vld [vmem:[%s277 + $0x328] sm:$0xff]
        %v446 = vld [vmem:[%s277 + $0x330] sm:$0xff]
        %v447 = vld [vmem:[%s277 + $0x338] sm:$0xff]
        %v448 = vld [vmem:[%s277 + $0x340] sm:$0xff]
        %v449 = vld [vmem:[%s277 + $0x348] sm:$0xff]
        %v450 = vld [vmem:[%s277 + $0x350] sm:$0xff]
        %v451 = vld [vmem:[%s277 + $0x358] sm:$0xff]
        %v452 = vld [vmem:[%s277 + $0x360] sm:$0xff]
        %v453 = vld [vmem:[%s277 + $0x368] sm:$0xff]
        %v454 = vld [vmem:[%s277 + $0x370] sm:$0xff]
        %v455 = vld [vmem:[%s277 + $0x378] sm:$0xff]
        %v456 = vld [vmem:[%s277 + $0x380] sm:$0xff]
        %v457 = vld [vmem:[%s277 + $0x388] sm:$0xff]
        %v458 = vld [vmem:[%s277 + $0x390] sm:$0xff]
        %v459 = vld [vmem:[%s277 + $0x398] sm:$0xff]
        %v460 = vld [vmem:[%s277 + $0x3a0] sm:$0xff]
        %v461 = vld [vmem:[%s277 + $0x3a8] sm:$0xff]
        %v462 = vld [vmem:[%s277 + $0x3b0] sm:$0xff]
        %v463 = vld [vmem:[%s277 + $0x3b8] sm:$0xff]
        %v464 = vld [vmem:[%s277 + $0x3c0] sm:$0xff]
        %v465 = vld [vmem:[%s277 + $0x3c8] sm:$0xff]
        %v466 = vld [vmem:[%s277 + $0x3d0] sm:$0xff]
        %v467 = vld [vmem:[%s277 + $0x3d8] sm:$0xff]
        %v468 = vld [vmem:[%s277 + $0x3e0] sm:$0xff]
        %v469 = vld [vmem:[%s277 + $0x3e8] sm:$0xff]
        %v470 = vld [vmem:[%s277 + $0x3f0] sm:$0xff]
        %v471 = vld [vmem:[%s277 + $0x3f8] sm:$0xff]
        %v472 = vld [vmem:[%s277 + $0x400] sm:$0xff]
        %v473 = vld [vmem:[%s277 + $0x408] sm:$0xff]
        %v474 = vld [vmem:[%s277 + $0x410] sm:$0xff]
        %v475 = vld [vmem:[%s277 + $0x418] sm:$0xff]
        %v476 = vld [vmem:[%s277 + $0x420] sm:$0xff]
        %v477 = vld [vmem:[%s277 + $0x428] sm:$0xff]
        %v478 = vld [vmem:[%s277 + $0x430] sm:$0xff]
        %v479 = vld [vmem:[%s277 + $0x438] sm:$0xff]
        %v480 = vld [vmem:[%s277 + $0x440] sm:$0xff]
        %v481 = vld [vmem:[%s277 + $0x448] sm:$0xff]
        %v482 = vld [vmem:[%s277 + $0x450] sm:$0xff]
        %v483 = vld [vmem:[%s277 + $0x458] sm:$0xff]
        %v484 = vld [vmem:[%s277 + $0x460] sm:$0xff]
        %v485 = vld [vmem:[%s277 + $0x468] sm:$0xff]
        %v486 = vld [vmem:[%s277 + $0x470] sm:$0xff]
        %v487 = vld [vmem:[%s277 + $0x478] sm:$0xff]
        %v488 = vld [vmem:[%s277 + $0x480] sm:$0xff]
        %v489 = vld [vmem:[%s277 + $0x488] sm:$0xff]
        %v490 = vld [vmem:[%s277 + $0x490] sm:$0xff]
        %v491 = vld [vmem:[%s277 + $0x498] sm:$0xff]
        %v492 = vld [vmem:[%s277 + $0x4a0] sm:$0xff]
        %v493 = vld [vmem:[%s277 + $0x4a8] sm:$0xff]
        %v494 = vld [vmem:[%s277 + $0x4b0] sm:$0xff]
        %v495 = vld [vmem:[%s277 + $0x4b8] sm:$0xff]
        %v496 = vld [vmem:[%s277 + $0x4c0] sm:$0xff]
        %v497 = vld [vmem:[%s277 + $0x4c8] sm:$0xff]
        %v498 = vld [vmem:[%s277 + $0x4d0] sm:$0xff]
        %v499 = vld [vmem:[%s277 + $0x4d8] sm:$0xff]
        %v500 = vld [vmem:[%s277 + $0x4e0] sm:$0xff]
        %v501 = vld [vmem:[%s277 + $0x4e8] sm:$0xff]
        %v502 = vld [vmem:[%s277 + $0x4f0] sm:$0xff]
        %v503 = vld [vmem:[%s277 + $0x4f8] sm:$0xff]
        %v504 = vld [vmem:[%s277 + $0x500] sm:$0xff]
        %v505 = vld [vmem:[%s277 + $0x508] sm:$0xff]
        %v506 = vld [vmem:[%s277 + $0x510] sm:$0xff]
        %v507 = vld [vmem:[%s277 + $0x518] sm:$0xff]
        %v508 = vld [vmem:[%s277 + $0x520] sm:$0xff]
        %v509 = vld [vmem:[%s277 + $0x528] sm:$0xff]
        %v510 = vld [vmem:[%s277 + $0x530] sm:$0xff]
        %v511 = vld [vmem:[%s277 + $0x538] sm:$0xff]
        %v512 = vld [vmem:[%s277 + $0x540] sm:$0xff]
        %v513 = vld [vmem:[%s277 + $0x548] sm:$0xff]
        %v514 = vld [vmem:[%s277 + $0x550] sm:$0xff]
        %v515 = vld [vmem:[%s277 + $0x558] sm:$0xff]
        %v516 = vld [vmem:[%s277 + $0x560] sm:$0xff]
        %v517 = vld [vmem:[%s277 + $0x568] sm:$0xff]
        %v518 = vld [vmem:[%s277 + $0x570] sm:$0xff]
        %v519 = vld [vmem:[%s277 + $0x578] sm:$0xff]
        %v520 = vld [vmem:[%s277 + $0x580] sm:$0xff]
        %v521 = vld [vmem:[%s277 + $0x588] sm:$0xff]
        %v522 = vld [vmem:[%s277 + $0x590] sm:$0xff]
        %v523 = vld [vmem:[%s277 + $0x598] sm:$0xff]
        %v524 = vld [vmem:[%s277 + $0x5a0] sm:$0xff]
        %v525 = vld [vmem:[%s277 + $0x5a8] sm:$0xff]
        %v526 = vld [vmem:[%s277 + $0x5b0] sm:$0xff]
        %v527 = vld [vmem:[%s277 + $0x5b8] sm:$0xff]
        %v528 = vld [vmem:[%s277 + $0x5c0] sm:$0xff]
        %v529 = vld [vmem:[%s277 + $0x5c8] sm:$0xff]
        %v530 = vld [vmem:[%s277 + $0x5d0] sm:$0xff]
        %v531 = vld [vmem:[%s277 + $0x5d8] sm:$0xff]
        %v532 = vld [vmem:[%s277 + $0x5e0] sm:$0xff]
        %v533 = vld [vmem:[%s277 + $0x5e8] sm:$0xff]
        %v534 = vld [vmem:[%s277 + $0x5f0] sm:$0xff]
        %v535 = vld [vmem:[%s277 + $0x5f8] sm:$0xff]
        %v536 = vld [vmem:[%s277 + $0x600] sm:$0xff]
        %v537 = vld [vmem:[%s277 + $0x608] sm:$0xff]
        %v538 = vld [vmem:[%s277 + $0x610] sm:$0xff]
        %v539 = vld [vmem:[%s277 + $0x618] sm:$0xff]
        %v540 = vld [vmem:[%s277 + $0x620] sm:$0xff]
        %v541 = vld [vmem:[%s277 + $0x628] sm:$0xff]
        %v542 = vld [vmem:[%s277 + $0x630] sm:$0xff]
        %v543 = vld [vmem:[%s277 + $0x638] sm:$0xff]
        %v544 = vld [vmem:[%s277 + $0x640] sm:$0xff]
        %v545 = vld [vmem:[%s277 + $0x648] sm:$0xff]
        %v546 = vld [vmem:[%s277 + $0x650] sm:$0xff]
        %v547 = vld [vmem:[%s277 + $0x658] sm:$0xff]
        %v548 = vld [vmem:[%s277 + $0x660] sm:$0xff]
        %v549 = vld [vmem:[%s277 + $0x668] sm:$0xff]
        %v550 = vld [vmem:[%s277 + $0x670] sm:$0xff]
        %v551 = vld [vmem:[%s277 + $0x678] sm:$0xff]
        %v552 = vld [vmem:[%s277 + $0x680] sm:$0xff]
        %v553 = vld [vmem:[%s277 + $0x688] sm:$0xff]
        %v554 = vld [vmem:[%s277 + $0x690] sm:$0xff]
        %v555 = vld [vmem:[%s277 + $0x698] sm:$0xff]
        %v556 = vld [vmem:[%s277 + $0x6a0] sm:$0xff]
        %v557 = vld [vmem:[%s277 + $0x6a8] sm:$0xff]
        %v558 = vld [vmem:[%s277 + $0x6b0] sm:$0xff]
        %v559 = vld [vmem:[%s277 + $0x6b8] sm:$0xff]
        %v560 = vld [vmem:[%s277 + $0x6c0] sm:$0xff]
        %v561 = vld [vmem:[%s277 + $0x6c8] sm:$0xff]
        %v562 = vld [vmem:[%s277 + $0x6d0] sm:$0xff]
        %v563 = vld [vmem:[%s277 + $0x6d8] sm:$0xff]
        %v564 = vld [vmem:[%s277 + $0x6e0] sm:$0xff]
        %v565 = vld [vmem:[%s277 + $0x6e8] sm:$0xff]
        %v566 = vld [vmem:[%s277 + $0x6f0] sm:$0xff]
        %v567 = vld [vmem:[%s277 + $0x6f8] sm:$0xff]
        %v568 = vld [vmem:[%s277 + $0x700] sm:$0xff]
        %v569 = vld [vmem:[%s277 + $0x708] sm:$0xff]
        %v570 = vld [vmem:[%s277 + $0x710] sm:$0xff]
        %v571 = vld [vmem:[%s277 + $0x718] sm:$0xff]
        %v572 = vld [vmem:[%s277 + $0x720] sm:$0xff]
        %v573 = vld [vmem:[%s277 + $0x728] sm:$0xff]
        %v574 = vld [vmem:[%s277 + $0x730] sm:$0xff]
        %v575 = vld [vmem:[%s277 + $0x738] sm:$0xff]
        %v576 = vld [vmem:[%s277 + $0x740] sm:$0xff]
        %v577 = vld [vmem:[%s277 + $0x748] sm:$0xff]
        %v578 = vld [vmem:[%s277 + $0x750] sm:$0xff]
        %v579 = vld [vmem:[%s277 + $0x758] sm:$0xff]
        %v580 = vld [vmem:[%s277 + $0x760] sm:$0xff]
        %v581 = vld [vmem:[%s277 + $0x768] sm:$0xff]
        %v582 = vld [vmem:[%s277 + $0x770] sm:$0xff]
        %v583 = vld [vmem:[%s277 + $0x778] sm:$0xff]
        %v584 = vld [vmem:[%s277 + $0x780] sm:$0xff]
        %v585 = vld [vmem:[%s277 + $0x788] sm:$0xff]
        %v586 = vld [vmem:[%s277 + $0x790] sm:$0xff]
        %v587 = vld [vmem:[%s277 + $0x798] sm:$0xff]
        %v588 = vld [vmem:[%s277 + $0x7a0] sm:$0xff]
        %v589 = vld [vmem:[%s277 + $0x7a8] sm:$0xff]
        %v590 = vld [vmem:[%s277 + $0x7b0] sm:$0xff]
        %v591 = vld [vmem:[%s277 + $0x7b8] sm:$0xff]
        %v592 = vld [vmem:[%s277 + $0x7c0] sm:$0xff]
        %v593 = vld [vmem:[%s277 + $0x7c8] sm:$0xff]
        %v594 = vld [vmem:[%s277 + $0x7d0] sm:$0xff]
        %v595 = vld [vmem:[%s277 + $0x7d8] sm:$0xff]
        %v596 = vld [vmem:[%s277 + $0x7e0] sm:$0xff]
        %v597 = vld [vmem:[%s277 + $0x7e8] sm:$0xff]
        %v598 = vld [vmem:[%s277 + $0x7f0] sm:$0xff]
        %v599 = vld [vmem:[%s277 + $0x7f8] sm:$0xff]
        %v600 = vld [vmem:[%s286] sm:$0x3]
        %v602 = vlaneseq
        %v603 = vshrl.u32 %v602, 7
        %v604 = vsub.s32 0, %v603
        %v605 = vrot.slane %v600, %v604
        %v606 = vlaneseq
        %v607 = vshrl.u32 %v606, 7
        %v608 = vsub.s32 1, %v607
        %v609 = vrot.slane %v600, %v608
        %v616 = vcombine.high %v340, %v340
        %v618 = vunpack.c.l.s4 1983009808
        %v619 = vunpack.c.0.s8 %v618
        %v620 = vlaneseq
        %v621 = vshrl.u32 %v620, 7
        %v622 = vsub.s32 %v619, %v621
        %v623 = vrot.slane %v340, %v622
        %v625 = vunpack.c.l.s4 1983009808
        %v626 = vunpack.c.0.s8 %v625
        %v627 = vlaneseq
        %v628 = vshrl.u32 %v627, 7
        %v629 = vsub.s32 %v626, %v628
        %v630 = vrot.slane %v616, %v629
        %v631 = vcombine.high %v623, %v623
        %v632 = vcombine.high %v630, %v630
        %v633 = vcombine.high %v341, %v341
        %v635 = vunpack.c.l.s4 1983009808
        %v636 = vunpack.c.0.s8 %v635
        %v637 = vlaneseq
        %v638 = vshrl.u32 %v637, 7
        %v639 = vsub.s32 %v636, %v638
        %v640 = vrot.slane %v341, %v639
        %v642 = vunpack.c.l.s4 1983009808
        %v643 = vunpack.c.0.s8 %v642
        %v644 = vlaneseq
        %v645 = vshrl.u32 %v644, 7
        %v646 = vsub.s32 %v643, %v645
        %v647 = vrot.slane %v633, %v646
        %v648 = vcombine.high %v640, %v640
        %v649 = vcombine.high %v647, %v647
        %v650 = vcombine.high %v342, %v342
        %v652 = vunpack.c.l.s4 1983009808
        %v653 = vunpack.c.0.s8 %v652
        %v654 = vlaneseq
        %v655 = vshrl.u32 %v654, 7
        %v656 = vsub.s32 %v653, %v655
        %v657 = vrot.slane %v342, %v656
        %v659 = vunpack.c.l.s4 1983009808
        %v660 = vunpack.c.0.s8 %v659
        %v661 = vlaneseq
        %v662 = vshrl.u32 %v661, 7
        %v663 = vsub.s32 %v660, %v662
        %v664 = vrot.slane %v650, %v663
        %v665 = vcombine.high %v657, %v657
        %v666 = vcombine.high %v664, %v664
        %v667 = vcombine.high %v343, %v343
        %v669 = vunpack.c.l.s4 1983009808
        %v670 = vunpack.c.0.s8 %v669
        %v671 = vlaneseq
        %v672 = vshrl.u32 %v671, 7
        %v673 = vsub.s32 %v670, %v672
        %v674 = vrot.slane %v343, %v673
        %v676 = vunpack.c.l.s4 1983009808
        %v677 = vunpack.c.0.s8 %v676
        %v678 = vlaneseq
        %v679 = vshrl.u32 %v678, 7
        %v680 = vsub.s32 %v677, %v679
        %v681 = vrot.slane %v667, %v680
        %v682 = vcombine.high %v674, %v674
        %v683 = vcombine.high %v681, %v681
        %v956 = vunpack.c.l.b16 %v344
        %v957 = vunpack.c.h.b16 %v344
        %v958 = vunpack.c.l.b16 %v345
        %v959 = vunpack.c.h.b16 %v345
        %v960 = vunpack.c.l.b16 %v346
        %v961 = vunpack.c.h.b16 %v346
        %v962 = vunpack.c.l.b16 %v347
        %v963 = vunpack.c.h.b16 %v347
        %v964 = vunpack.c.l.b16 %v348
        %v965 = vunpack.c.h.b16 %v348
        %v966 = vunpack.c.l.b16 %v349
        %v967 = vunpack.c.h.b16 %v349
        %v968 = vunpack.c.l.b16 %v350
        %v969 = vunpack.c.h.b16 %v350
        %v970 = vunpack.c.l.b16 %v351
        %v971 = vunpack.c.h.b16 %v351
        %v972 = vunpack.c.l.b16 %v352
        %v973 = vunpack.c.h.b16 %v352
        %v974 = vunpack.c.l.b16 %v353
        %v975 = vunpack.c.h.b16 %v353
        %v976 = vunpack.c.l.b16 %v354
        %v977 = vunpack.c.h.b16 %v354
        %v978 = vunpack.c.l.b16 %v355
        %v979 = vunpack.c.h.b16 %v355
        %v980 = vunpack.c.l.b16 %v356
        %v981 = vunpack.c.h.b16 %v356
        %v982 = vunpack.c.l.b16 %v357
        %v983 = vunpack.c.h.b16 %v357
        %v984 = vunpack.c.l.b16 %v358
        %v985 = vunpack.c.h.b16 %v358
        %v986 = vunpack.c.l.b16 %v359
        %v987 = vunpack.c.h.b16 %v359
        %v988 = vunpack.c.l.b16 %v360
        %v989 = vunpack.c.h.b16 %v360
        %v990 = vunpack.c.l.b16 %v361
        %v991 = vunpack.c.h.b16 %v361
        %v992 = vunpack.c.l.b16 %v362
        %v993 = vunpack.c.h.b16 %v362
        %v994 = vunpack.c.l.b16 %v363
        %v995 = vunpack.c.h.b16 %v363
        %v996 = vunpack.c.l.b16 %v364
        %v997 = vunpack.c.h.b16 %v364
        %v998 = vunpack.c.l.b16 %v365
        %v999 = vunpack.c.h.b16 %v365
        %v1000 = vunpack.c.l.b16 %v366
        %v1001 = vunpack.c.h.b16 %v366
        %v1002 = vunpack.c.l.b16 %v367
        %v1003 = vunpack.c.h.b16 %v367
        %v1004 = vunpack.c.l.b16 %v368
        %v1005 = vunpack.c.h.b16 %v368
        %v1006 = vunpack.c.l.b16 %v369
        %v1007 = vunpack.c.h.b16 %v369
        %v1008 = vunpack.c.l.b16 %v370
        %v1009 = vunpack.c.h.b16 %v370
        %v1010 = vunpack.c.l.b16 %v371
        %v1011 = vunpack.c.h.b16 %v371
        %v1012 = vunpack.c.l.b16 %v372
        %v1013 = vunpack.c.h.b16 %v372
        %v1014 = vunpack.c.l.b16 %v373
        %v1015 = vunpack.c.h.b16 %v373
        %v1016 = vunpack.c.l.b16 %v374
        %v1017 = vunpack.c.h.b16 %v374
        %v1018 = vunpack.c.l.b16 %v375
        %v1019 = vunpack.c.h.b16 %v375
        %v1020 = vunpack.c.l.b16 %v376
        %v1021 = vunpack.c.h.b16 %v376
        %v1022 = vunpack.c.l.b16 %v377
        %v1023 = vunpack.c.h.b16 %v377
        %v1024 = vunpack.c.l.b16 %v378
        %v1025 = vunpack.c.h.b16 %v378
        %v1026 = vunpack.c.l.b16 %v379
        %v1027 = vunpack.c.h.b16 %v379
        %v1028 = vunpack.c.l.b16 %v380
        %v1029 = vunpack.c.h.b16 %v380
        %v1030 = vunpack.c.l.b16 %v381
        %v1031 = vunpack.c.h.b16 %v381
        %v1032 = vunpack.c.l.b16 %v382
        %v1033 = vunpack.c.h.b16 %v382
        %v1034 = vunpack.c.l.b16 %v383
        %v1035 = vunpack.c.h.b16 %v383
        %v1036 = vunpack.c.l.b16 %v384
        %v1037 = vunpack.c.h.b16 %v384
        %v1038 = vunpack.c.l.b16 %v385
        %v1039 = vunpack.c.h.b16 %v385
        %v1040 = vunpack.c.l.b16 %v386
        %v1041 = vunpack.c.h.b16 %v386
        %v1042 = vunpack.c.l.b16 %v387
        %v1043 = vunpack.c.h.b16 %v387
        %v1044 = vunpack.c.l.b16 %v388
        %v1045 = vunpack.c.h.b16 %v388
        %v1046 = vunpack.c.l.b16 %v389
        %v1047 = vunpack.c.h.b16 %v389
        %v1048 = vunpack.c.l.b16 %v390
        %v1049 = vunpack.c.h.b16 %v390
        %v1050 = vunpack.c.l.b16 %v391
        %v1051 = vunpack.c.h.b16 %v391
        %v1052 = vunpack.c.l.b16 %v392
        %v1053 = vunpack.c.h.b16 %v392
        %v1054 = vunpack.c.l.b16 %v393
        %v1055 = vunpack.c.h.b16 %v393
        %v1056 = vunpack.c.l.b16 %v394
        %v1057 = vunpack.c.h.b16 %v394
        %v1058 = vunpack.c.l.b16 %v395
        %v1059 = vunpack.c.h.b16 %v395
        %v1060 = vunpack.c.l.b16 %v396
        %v1061 = vunpack.c.h.b16 %v396
        %v1062 = vunpack.c.l.b16 %v397
        %v1063 = vunpack.c.h.b16 %v397
        %v1064 = vunpack.c.l.b16 %v398
        %v1065 = vunpack.c.h.b16 %v398
        %v1066 = vunpack.c.l.b16 %v399
        %v1067 = vunpack.c.h.b16 %v399
        %v1068 = vunpack.c.l.b16 %v400
        %v1069 = vunpack.c.h.b16 %v400
        %v1070 = vunpack.c.l.b16 %v401
        %v1071 = vunpack.c.h.b16 %v401
        %v1072 = vunpack.c.l.b16 %v402
        %v1073 = vunpack.c.h.b16 %v402
        %v1074 = vunpack.c.l.b16 %v403
        %v1075 = vunpack.c.h.b16 %v403
        %v1076 = vunpack.c.l.b16 %v404
        %v1077 = vunpack.c.h.b16 %v404
        %v1078 = vunpack.c.l.b16 %v405
        %v1079 = vunpack.c.h.b16 %v405
        %v1080 = vunpack.c.l.b16 %v406
        %v1081 = vunpack.c.h.b16 %v406
        %v1082 = vunpack.c.l.b16 %v407
        %v1083 = vunpack.c.h.b16 %v407
        %v1084 = vunpack.c.l.b16 %v408
        %v1085 = vunpack.c.h.b16 %v408
        %v1086 = vunpack.c.l.b16 %v409
        %v1087 = vunpack.c.h.b16 %v409
        %v1088 = vunpack.c.l.b16 %v410
        %v1089 = vunpack.c.h.b16 %v410
        %v1090 = vunpack.c.l.b16 %v411
        %v1091 = vunpack.c.h.b16 %v411
        %v1092 = vunpack.c.l.b16 %v412
        %v1093 = vunpack.c.h.b16 %v412
        %v1094 = vunpack.c.l.b16 %v413
        %v1095 = vunpack.c.h.b16 %v413
        %v1096 = vunpack.c.l.b16 %v414
        %v1097 = vunpack.c.h.b16 %v414
        %v1098 = vunpack.c.l.b16 %v415
        %v1099 = vunpack.c.h.b16 %v415
        %v1100 = vunpack.c.l.b16 %v416
        %v1101 = vunpack.c.h.b16 %v416
        %v1102 = vunpack.c.l.b16 %v417
        %v1103 = vunpack.c.h.b16 %v417
        %v1104 = vunpack.c.l.b16 %v418
        %v1105 = vunpack.c.h.b16 %v418
        %v1106 = vunpack.c.l.b16 %v419
        %v1107 = vunpack.c.h.b16 %v419
        %v1108 = vunpack.c.l.b16 %v420
        %v1109 = vunpack.c.h.b16 %v420
        %v1110 = vunpack.c.l.b16 %v421
        %v1111 = vunpack.c.h.b16 %v421
        %v1112 = vunpack.c.l.b16 %v422
        %v1113 = vunpack.c.h.b16 %v422
        %v1114 = vunpack.c.l.b16 %v423
        %v1115 = vunpack.c.h.b16 %v423
        %v1116 = vunpack.c.l.b16 %v424
        %v1117 = vunpack.c.h.b16 %v424
        %v1118 = vunpack.c.l.b16 %v425
        %v1119 = vunpack.c.h.b16 %v425
        %v1120 = vunpack.c.l.b16 %v426
        %v1121 = vunpack.c.h.b16 %v426
        %v1122 = vunpack.c.l.b16 %v427
        %v1123 = vunpack.c.h.b16 %v427
        %v1124 = vunpack.c.l.b16 %v428
        %v1125 = vunpack.c.h.b16 %v428
        %v1126 = vunpack.c.l.b16 %v429
        %v1127 = vunpack.c.h.b16 %v429
        %v1128 = vunpack.c.l.b16 %v430
        %v1129 = vunpack.c.h.b16 %v430
        %v1130 = vunpack.c.l.b16 %v431
        %v1131 = vunpack.c.h.b16 %v431
        %v1132 = vunpack.c.l.b16 %v432
        %v1133 = vunpack.c.h.b16 %v432
        %v1134 = vunpack.c.l.b16 %v433
        %v1135 = vunpack.c.h.b16 %v433
        %v1136 = vunpack.c.l.b16 %v434
        %v1137 = vunpack.c.h.b16 %v434
        %v1138 = vunpack.c.l.b16 %v435
        %v1139 = vunpack.c.h.b16 %v435
        %v1140 = vunpack.c.l.b16 %v436
        %v1141 = vunpack.c.h.b16 %v436
        %v1142 = vunpack.c.l.b16 %v437
        %v1143 = vunpack.c.h.b16 %v437
        %v1144 = vunpack.c.l.b16 %v438
        %v1145 = vunpack.c.h.b16 %v438
        %v1146 = vunpack.c.l.b16 %v439
        %v1147 = vunpack.c.h.b16 %v439
        %v1148 = vunpack.c.l.b16 %v440
        %v1149 = vunpack.c.h.b16 %v440
        %v1150 = vunpack.c.l.b16 %v441
        %v1151 = vunpack.c.h.b16 %v441
        %v1152 = vunpack.c.l.b16 %v442
        %v1153 = vunpack.c.h.b16 %v442
        %v1154 = vunpack.c.l.b16 %v443
        %v1155 = vunpack.c.h.b16 %v443
        %v1156 = vunpack.c.l.b16 %v444
        %v1157 = vunpack.c.h.b16 %v444
        %v1158 = vunpack.c.l.b16 %v445
        %v1159 = vunpack.c.h.b16 %v445
        %v1160 = vunpack.c.l.b16 %v446
        %v1161 = vunpack.c.h.b16 %v446
        %v1162 = vunpack.c.l.b16 %v447
        %v1163 = vunpack.c.h.b16 %v447
        %v1164 = vunpack.c.l.b16 %v448
        %v1165 = vunpack.c.h.b16 %v448
        %v1166 = vunpack.c.l.b16 %v449
        %v1167 = vunpack.c.h.b16 %v449
        %v1168 = vunpack.c.l.b16 %v450
        %v1169 = vunpack.c.h.b16 %v450
        %v1170 = vunpack.c.l.b16 %v451
        %v1171 = vunpack.c.h.b16 %v451
        %v1172 = vunpack.c.l.b16 %v452
        %v1173 = vunpack.c.h.b16 %v452
        %v1174 = vunpack.c.l.b16 %v453
        %v1175 = vunpack.c.h.b16 %v453
        %v1176 = vunpack.c.l.b16 %v454
        %v1177 = vunpack.c.h.b16 %v454
        %v1178 = vunpack.c.l.b16 %v455
        %v1179 = vunpack.c.h.b16 %v455
        %v1180 = vunpack.c.l.b16 %v456
        %v1181 = vunpack.c.h.b16 %v456
        %v1182 = vunpack.c.l.b16 %v457
        %v1183 = vunpack.c.h.b16 %v457
        %v1184 = vunpack.c.l.b16 %v458
        %v1185 = vunpack.c.h.b16 %v458
        %v1186 = vunpack.c.l.b16 %v459
        %v1187 = vunpack.c.h.b16 %v459
        %v1188 = vunpack.c.l.b16 %v460
        %v1189 = vunpack.c.h.b16 %v460
        %v1190 = vunpack.c.l.b16 %v461
        %v1191 = vunpack.c.h.b16 %v461
        %v1192 = vunpack.c.l.b16 %v462
        %v1193 = vunpack.c.h.b16 %v462
        %v1194 = vunpack.c.l.b16 %v463
        %v1195 = vunpack.c.h.b16 %v463
        %v1196 = vunpack.c.l.b16 %v464
        %v1197 = vunpack.c.h.b16 %v464
        %v1198 = vunpack.c.l.b16 %v465
        %v1199 = vunpack.c.h.b16 %v465
        %v1200 = vunpack.c.l.b16 %v466
        %v1201 = vunpack.c.h.b16 %v466
        %v1202 = vunpack.c.l.b16 %v467
        %v1203 = vunpack.c.h.b16 %v467
        %v1204 = vunpack.c.l.b16 %v468
        %v1205 = vunpack.c.h.b16 %v468
        %v1206 = vunpack.c.l.b16 %v469
        %v1207 = vunpack.c.h.b16 %v469
        %v1208 = vunpack.c.l.b16 %v470
        %v1209 = vunpack.c.h.b16 %v470
        %v1210 = vunpack.c.l.b16 %v471
        %v1211 = vunpack.c.h.b16 %v471
        %v1212 = vunpack.c.l.b16 %v472
        %v1213 = vunpack.c.h.b16 %v472
        %v1214 = vunpack.c.l.b16 %v473
        %v1215 = vunpack.c.h.b16 %v473
        %v1216 = vunpack.c.l.b16 %v474
        %v1217 = vunpack.c.h.b16 %v474
        %v1218 = vunpack.c.l.b16 %v475
        %v1219 = vunpack.c.h.b16 %v475
        %v1220 = vunpack.c.l.b16 %v476
        %v1221 = vunpack.c.h.b16 %v476
        %v1222 = vunpack.c.l.b16 %v477
        %v1223 = vunpack.c.h.b16 %v477
        %v1224 = vunpack.c.l.b16 %v478
        %v1225 = vunpack.c.h.b16 %v478
        %v1226 = vunpack.c.l.b16 %v479
        %v1227 = vunpack.c.h.b16 %v479
        %v1228 = vunpack.c.l.b16 %v480
        %v1229 = vunpack.c.h.b16 %v480
        %v1230 = vunpack.c.l.b16 %v481
        %v1231 = vunpack.c.h.b16 %v481
        %v1232 = vunpack.c.l.b16 %v482
        %v1233 = vunpack.c.h.b16 %v482
        %v1234 = vunpack.c.l.b16 %v483
        %v1235 = vunpack.c.h.b16 %v483
        %v1236 = vunpack.c.l.b16 %v484
        %v1237 = vunpack.c.h.b16 %v484
        %v1238 = vunpack.c.l.b16 %v485
        %v1239 = vunpack.c.h.b16 %v485
        %v1240 = vunpack.c.l.b16 %v486
        %v1241 = vunpack.c.h.b16 %v486
        %v1242 = vunpack.c.l.b16 %v487
        %v1243 = vunpack.c.h.b16 %v487
        %v1244 = vunpack.c.l.b16 %v488
        %v1245 = vunpack.c.h.b16 %v488
        %v1246 = vunpack.c.l.b16 %v489
        %v1247 = vunpack.c.h.b16 %v489
        %v1248 = vunpack.c.l.b16 %v490
        %v1249 = vunpack.c.h.b16 %v490
        %v1250 = vunpack.c.l.b16 %v491
        %v1251 = vunpack.c.h.b16 %v491
        %v1252 = vunpack.c.l.b16 %v492
        %v1253 = vunpack.c.h.b16 %v492
        %v1254 = vunpack.c.l.b16 %v493
        %v1255 = vunpack.c.h.b16 %v493
        %v1256 = vunpack.c.l.b16 %v494
        %v1257 = vunpack.c.h.b16 %v494
        %v1258 = vunpack.c.l.b16 %v495
        %v1259 = vunpack.c.h.b16 %v495
        %v1260 = vunpack.c.l.b16 %v496
        %v1261 = vunpack.c.h.b16 %v496
        %v1262 = vunpack.c.l.b16 %v497
        %v1263 = vunpack.c.h.b16 %v497
        %v1264 = vunpack.c.l.b16 %v498
        %v1265 = vunpack.c.h.b16 %v498
        %v1266 = vunpack.c.l.b16 %v499
        %v1267 = vunpack.c.h.b16 %v499
        %v1268 = vunpack.c.l.b16 %v500
        %v1269 = vunpack.c.h.b16 %v500
        %v1270 = vunpack.c.l.b16 %v501
        %v1271 = vunpack.c.h.b16 %v501
        %v1272 = vunpack.c.l.b16 %v502
        %v1273 = vunpack.c.h.b16 %v502
        %v1274 = vunpack.c.l.b16 %v503
        %v1275 = vunpack.c.h.b16 %v503
        %v1276 = vunpack.c.l.b16 %v504
        %v1277 = vunpack.c.h.b16 %v504
        %v1278 = vunpack.c.l.b16 %v505
        %v1279 = vunpack.c.h.b16 %v505
        %v1280 = vunpack.c.l.b16 %v506
        %v1281 = vunpack.c.h.b16 %v506
        %v1282 = vunpack.c.l.b16 %v507
        %v1283 = vunpack.c.h.b16 %v507
        %v1284 = vunpack.c.l.b16 %v508
        %v1285 = vunpack.c.h.b16 %v508
        %v1286 = vunpack.c.l.b16 %v509
        %v1287 = vunpack.c.h.b16 %v509
        %v1288 = vunpack.c.l.b16 %v510
        %v1289 = vunpack.c.h.b16 %v510
        %v1290 = vunpack.c.l.b16 %v511
        %v1291 = vunpack.c.h.b16 %v511
        %v1292 = vunpack.c.l.b16 %v512
        %v1293 = vunpack.c.h.b16 %v512
        %v1294 = vunpack.c.l.b16 %v513
        %v1295 = vunpack.c.h.b16 %v513
        %v1296 = vunpack.c.l.b16 %v514
        %v1297 = vunpack.c.h.b16 %v514
        %v1298 = vunpack.c.l.b16 %v515
        %v1299 = vunpack.c.h.b16 %v515
        %v1300 = vunpack.c.l.b16 %v516
        %v1301 = vunpack.c.h.b16 %v516
        %v1302 = vunpack.c.l.b16 %v517
        %v1303 = vunpack.c.h.b16 %v517
        %v1304 = vunpack.c.l.b16 %v518
        %v1305 = vunpack.c.h.b16 %v518
        %v1306 = vunpack.c.l.b16 %v519
        %v1307 = vunpack.c.h.b16 %v519
        %v1308 = vunpack.c.l.b16 %v520
        %v1309 = vunpack.c.h.b16 %v520
        %v1310 = vunpack.c.l.b16 %v521
        %v1311 = vunpack.c.h.b16 %v521
        %v1312 = vunpack.c.l.b16 %v522
        %v1313 = vunpack.c.h.b16 %v522
        %v1314 = vunpack.c.l.b16 %v523
        %v1315 = vunpack.c.h.b16 %v523
        %v1316 = vunpack.c.l.b16 %v524
        %v1317 = vunpack.c.h.b16 %v524
        %v1318 = vunpack.c.l.b16 %v525
        %v1319 = vunpack.c.h.b16 %v525
        %v1320 = vunpack.c.l.b16 %v526
        %v1321 = vunpack.c.h.b16 %v526
        %v1322 = vunpack.c.l.b16 %v527
        %v1323 = vunpack.c.h.b16 %v527
        %v1324 = vunpack.c.l.b16 %v528
        %v1325 = vunpack.c.h.b16 %v528
        %v1326 = vunpack.c.l.b16 %v529
        %v1327 = vunpack.c.h.b16 %v529
        %v1328 = vunpack.c.l.b16 %v530
        %v1329 = vunpack.c.h.b16 %v530
        %v1330 = vunpack.c.l.b16 %v531
        %v1331 = vunpack.c.h.b16 %v531
        %v1332 = vunpack.c.l.b16 %v532
        %v1333 = vunpack.c.h.b16 %v532
        %v1334 = vunpack.c.l.b16 %v533
        %v1335 = vunpack.c.h.b16 %v533
        %v1336 = vunpack.c.l.b16 %v534
        %v1337 = vunpack.c.h.b16 %v534
        %v1338 = vunpack.c.l.b16 %v535
        %v1339 = vunpack.c.h.b16 %v535
        %v1340 = vunpack.c.l.b16 %v536
        %v1341 = vunpack.c.h.b16 %v536
        %v1342 = vunpack.c.l.b16 %v537
        %v1343 = vunpack.c.h.b16 %v537
        %v1344 = vunpack.c.l.b16 %v538
        %v1345 = vunpack.c.h.b16 %v538
        %v1346 = vunpack.c.l.b16 %v539
        %v1347 = vunpack.c.h.b16 %v539
        %v1348 = vunpack.c.l.b16 %v540
        %v1349 = vunpack.c.h.b16 %v540
        %v1350 = vunpack.c.l.b16 %v541
        %v1351 = vunpack.c.h.b16 %v541
        %v1352 = vunpack.c.l.b16 %v542
        %v1353 = vunpack.c.h.b16 %v542
        %v1354 = vunpack.c.l.b16 %v543
        %v1355 = vunpack.c.h.b16 %v543
        %v1356 = vunpack.c.l.b16 %v544
        %v1357 = vunpack.c.h.b16 %v544
        %v1358 = vunpack.c.l.b16 %v545
        %v1359 = vunpack.c.h.b16 %v545
        %v1360 = vunpack.c.l.b16 %v546
        %v1361 = vunpack.c.h.b16 %v546
        %v1362 = vunpack.c.l.b16 %v547
        %v1363 = vunpack.c.h.b16 %v547
        %v1364 = vunpack.c.l.b16 %v548
        %v1365 = vunpack.c.h.b16 %v548
        %v1366 = vunpack.c.l.b16 %v549
        %v1367 = vunpack.c.h.b16 %v549
        %v1368 = vunpack.c.l.b16 %v550
        %v1369 = vunpack.c.h.b16 %v550
        %v1370 = vunpack.c.l.b16 %v551
        %v1371 = vunpack.c.h.b16 %v551
        %v1372 = vunpack.c.l.b16 %v552
        %v1373 = vunpack.c.h.b16 %v552
        %v1374 = vunpack.c.l.b16 %v553
        %v1375 = vunpack.c.h.b16 %v553
        %v1376 = vunpack.c.l.b16 %v554
        %v1377 = vunpack.c.h.b16 %v554
        %v1378 = vunpack.c.l.b16 %v555
        %v1379 = vunpack.c.h.b16 %v555
        %v1380 = vunpack.c.l.b16 %v556
        %v1381 = vunpack.c.h.b16 %v556
        %v1382 = vunpack.c.l.b16 %v557
        %v1383 = vunpack.c.h.b16 %v557
        %v1384 = vunpack.c.l.b16 %v558
        %v1385 = vunpack.c.h.b16 %v558
        %v1386 = vunpack.c.l.b16 %v559
        %v1387 = vunpack.c.h.b16 %v559
        %v1388 = vunpack.c.l.b16 %v560
        %v1389 = vunpack.c.h.b16 %v560
        %v1390 = vunpack.c.l.b16 %v561
        %v1391 = vunpack.c.h.b16 %v561
        %v1392 = vunpack.c.l.b16 %v562
        %v1393 = vunpack.c.h.b16 %v562
        %v1394 = vunpack.c.l.b16 %v563
        %v1395 = vunpack.c.h.b16 %v563
        %v1396 = vunpack.c.l.b16 %v564
        %v1397 = vunpack.c.h.b16 %v564
        %v1398 = vunpack.c.l.b16 %v565
        %v1399 = vunpack.c.h.b16 %v565
        %v1400 = vunpack.c.l.b16 %v566
        %v1401 = vunpack.c.h.b16 %v566
        %v1402 = vunpack.c.l.b16 %v567
        %v1403 = vunpack.c.h.b16 %v567
        %v1404 = vunpack.c.l.b16 %v568
        %v1405 = vunpack.c.h.b16 %v568
        %v1406 = vunpack.c.l.b16 %v569
        %v1407 = vunpack.c.h.b16 %v569
        %v1408 = vunpack.c.l.b16 %v570
        %v1409 = vunpack.c.h.b16 %v570
        %v1410 = vunpack.c.l.b16 %v571
        %v1411 = vunpack.c.h.b16 %v571
        %v1412 = vunpack.c.l.b16 %v572
        %v1413 = vunpack.c.h.b16 %v572
        %v1414 = vunpack.c.l.b16 %v573
        %v1415 = vunpack.c.h.b16 %v573
        %v1416 = vunpack.c.l.b16 %v574
        %v1417 = vunpack.c.h.b16 %v574
        %v1418 = vunpack.c.l.b16 %v575
        %v1419 = vunpack.c.h.b16 %v575
        %v1420 = vunpack.c.l.b16 %v576
        %v1421 = vunpack.c.h.b16 %v576
        %v1422 = vunpack.c.l.b16 %v577
        %v1423 = vunpack.c.h.b16 %v577
        %v1424 = vunpack.c.l.b16 %v578
        %v1425 = vunpack.c.h.b16 %v578
        %v1426 = vunpack.c.l.b16 %v579
        %v1427 = vunpack.c.h.b16 %v579
        %v1428 = vunpack.c.l.b16 %v580
        %v1429 = vunpack.c.h.b16 %v580
        %v1430 = vunpack.c.l.b16 %v581
        %v1431 = vunpack.c.h.b16 %v581
        %v1432 = vunpack.c.l.b16 %v582
        %v1433 = vunpack.c.h.b16 %v582
        %v1434 = vunpack.c.l.b16 %v583
        %v1435 = vunpack.c.h.b16 %v583
        %v1436 = vunpack.c.l.b16 %v584
        %v1437 = vunpack.c.h.b16 %v584
        %v1438 = vunpack.c.l.b16 %v585
        %v1439 = vunpack.c.h.b16 %v585
        %v1440 = vunpack.c.l.b16 %v586
        %v1441 = vunpack.c.h.b16 %v586
        %v1442 = vunpack.c.l.b16 %v587
        %v1443 = vunpack.c.h.b16 %v587
        %v1444 = vunpack.c.l.b16 %v588
        %v1445 = vunpack.c.h.b16 %v588
        %v1446 = vunpack.c.l.b16 %v589
        %v1447 = vunpack.c.h.b16 %v589
        %v1448 = vunpack.c.l.b16 %v590
        %v1449 = vunpack.c.h.b16 %v590
        %v1450 = vunpack.c.l.b16 %v591
        %v1451 = vunpack.c.h.b16 %v591
        %v1452 = vunpack.c.l.b16 %v592
        %v1453 = vunpack.c.h.b16 %v592
        %v1454 = vunpack.c.l.b16 %v593
        %v1455 = vunpack.c.h.b16 %v593
        %v1456 = vunpack.c.l.b16 %v594
        %v1457 = vunpack.c.h.b16 %v594
        %v1458 = vunpack.c.l.b16 %v595
        %v1459 = vunpack.c.h.b16 %v595
        %v1460 = vunpack.c.l.b16 %v596
        %v1461 = vunpack.c.h.b16 %v596
        %v1462 = vunpack.c.l.b16 %v597
        %v1463 = vunpack.c.h.b16 %v597
        %v1464 = vunpack.c.l.b16 %v598
        %v1465 = vunpack.c.h.b16 %v598
        %v1466 = vunpack.c.l.b16 %v599
        %v1467 = vunpack.c.h.b16 %v599
        %v1468 = vpack.c.b16 %v958, %v956
        %v1469 = vpack.c.b16 %v959, %v957
        %v1470 = vpack.c.b16 %v962, %v960
        %v1471 = vpack.c.b16 %v963, %v961
        %v1472 = vpack.c.b16 %v966, %v964
        %v1473 = vpack.c.b16 %v967, %v965
        %v1474 = vpack.c.b16 %v970, %v968
        %v1475 = vpack.c.b16 %v971, %v969
        %v1476 = vpack.c.b16 %v974, %v972
        %v1477 = vpack.c.b16 %v975, %v973
        %v1478 = vpack.c.b16 %v978, %v976
        %v1479 = vpack.c.b16 %v979, %v977
        %v1480 = vpack.c.b16 %v982, %v980
        %v1481 = vpack.c.b16 %v983, %v981
        %v1482 = vpack.c.b16 %v986, %v984
        %v1483 = vpack.c.b16 %v987, %v985
        %v1484 = vpack.c.b16 %v990, %v988
        %v1485 = vpack.c.b16 %v991, %v989
        %v1486 = vpack.c.b16 %v994, %v992
        %v1487 = vpack.c.b16 %v995, %v993
        %v1488 = vpack.c.b16 %v998, %v996
        %v1489 = vpack.c.b16 %v999, %v997
        %v1490 = vpack.c.b16 %v1002, %v1000
        %v1491 = vpack.c.b16 %v1003, %v1001
        %v1492 = vpack.c.b16 %v1006, %v1004
        %v1493 = vpack.c.b16 %v1007, %v1005
        %v1494 = vpack.c.b16 %v1010, %v1008
        %v1495 = vpack.c.b16 %v1011, %v1009
        %v1496 = vpack.c.b16 %v1014, %v1012
        %v1497 = vpack.c.b16 %v1015, %v1013
        %v1498 = vpack.c.b16 %v1018, %v1016
        %v1499 = vpack.c.b16 %v1019, %v1017
        %v1500 = vpack.c.b16 %v1022, %v1020
        %v1501 = vpack.c.b16 %v1023, %v1021
        %v1502 = vpack.c.b16 %v1026, %v1024
        %v1503 = vpack.c.b16 %v1027, %v1025
        %v1504 = vpack.c.b16 %v1030, %v1028
        %v1505 = vpack.c.b16 %v1031, %v1029
        %v1506 = vpack.c.b16 %v1034, %v1032
        %v1507 = vpack.c.b16 %v1035, %v1033
        %v1508 = vpack.c.b16 %v1038, %v1036
        %v1509 = vpack.c.b16 %v1039, %v1037
        %v1510 = vpack.c.b16 %v1042, %v1040
        %v1511 = vpack.c.b16 %v1043, %v1041
        %v1512 = vpack.c.b16 %v1046, %v1044
        %v1513 = vpack.c.b16 %v1047, %v1045
        %v1514 = vpack.c.b16 %v1050, %v1048
        %v1515 = vpack.c.b16 %v1051, %v1049
        %v1516 = vpack.c.b16 %v1054, %v1052
        %v1517 = vpack.c.b16 %v1055, %v1053
        %v1518 = vpack.c.b16 %v1058, %v1056
        %v1519 = vpack.c.b16 %v1059, %v1057
        %v1520 = vpack.c.b16 %v1062, %v1060
        %v1521 = vpack.c.b16 %v1063, %v1061
        %v1522 = vpack.c.b16 %v1066, %v1064
        %v1523 = vpack.c.b16 %v1067, %v1065
        %v1524 = vpack.c.b16 %v1070, %v1068
        %v1525 = vpack.c.b16 %v1071, %v1069
        %v1526 = vpack.c.b16 %v1074, %v1072
        %v1527 = vpack.c.b16 %v1075, %v1073
        %v1528 = vpack.c.b16 %v1078, %v1076
        %v1529 = vpack.c.b16 %v1079, %v1077
        %v1530 = vpack.c.b16 %v1082, %v1080
        %v1531 = vpack.c.b16 %v1083, %v1081
        %v1532 = vpack.c.b16 %v1086, %v1084
        %v1533 = vpack.c.b16 %v1087, %v1085
        %v1534 = vpack.c.b16 %v1090, %v1088
        %v1535 = vpack.c.b16 %v1091, %v1089
        %v1536 = vpack.c.b16 %v1094, %v1092
        %v1537 = vpack.c.b16 %v1095, %v1093
        %v1538 = vpack.c.b16 %v1098, %v1096
        %v1539 = vpack.c.b16 %v1099, %v1097
        %v1540 = vpack.c.b16 %v1102, %v1100
        %v1541 = vpack.c.b16 %v1103, %v1101
        %v1542 = vpack.c.b16 %v1106, %v1104
        %v1543 = vpack.c.b16 %v1107, %v1105
        %v1544 = vpack.c.b16 %v1110, %v1108
        %v1545 = vpack.c.b16 %v1111, %v1109
        %v1546 = vpack.c.b16 %v1114, %v1112
        %v1547 = vpack.c.b16 %v1115, %v1113
        %v1548 = vpack.c.b16 %v1118, %v1116
        %v1549 = vpack.c.b16 %v1119, %v1117
        %v1550 = vpack.c.b16 %v1122, %v1120
        %v1551 = vpack.c.b16 %v1123, %v1121
        %v1552 = vpack.c.b16 %v1126, %v1124
        %v1553 = vpack.c.b16 %v1127, %v1125
        %v1554 = vpack.c.b16 %v1130, %v1128
        %v1555 = vpack.c.b16 %v1131, %v1129
        %v1556 = vpack.c.b16 %v1134, %v1132
        %v1557 = vpack.c.b16 %v1135, %v1133
        %v1558 = vpack.c.b16 %v1138, %v1136
        %v1559 = vpack.c.b16 %v1139, %v1137
        %v1560 = vpack.c.b16 %v1142, %v1140
        %v1561 = vpack.c.b16 %v1143, %v1141
        %v1562 = vpack.c.b16 %v1146, %v1144
        %v1563 = vpack.c.b16 %v1147, %v1145
        %v1564 = vpack.c.b16 %v1150, %v1148
        %v1565 = vpack.c.b16 %v1151, %v1149
        %v1566 = vpack.c.b16 %v1154, %v1152
        %v1567 = vpack.c.b16 %v1155, %v1153
        %v1568 = vpack.c.b16 %v1158, %v1156
        %v1569 = vpack.c.b16 %v1159, %v1157
        %v1570 = vpack.c.b16 %v1162, %v1160
        %v1571 = vpack.c.b16 %v1163, %v1161
        %v1572 = vpack.c.b16 %v1166, %v1164
        %v1573 = vpack.c.b16 %v1167, %v1165
        %v1574 = vpack.c.b16 %v1170, %v1168
        %v1575 = vpack.c.b16 %v1171, %v1169
        %v1576 = vpack.c.b16 %v1174, %v1172
        %v1577 = vpack.c.b16 %v1175, %v1173
        %v1578 = vpack.c.b16 %v1178, %v1176
        %v1579 = vpack.c.b16 %v1179, %v1177
        %v1580 = vpack.c.b16 %v1182, %v1180
        %v1581 = vpack.c.b16 %v1183, %v1181
        %v1582 = vpack.c.b16 %v1186, %v1184
        %v1583 = vpack.c.b16 %v1187, %v1185
        %v1584 = vpack.c.b16 %v1190, %v1188
        %v1585 = vpack.c.b16 %v1191, %v1189
        %v1586 = vpack.c.b16 %v1194, %v1192
        %v1587 = vpack.c.b16 %v1195, %v1193
        %v1588 = vpack.c.b16 %v1198, %v1196
        %v1589 = vpack.c.b16 %v1199, %v1197
        %v1590 = vpack.c.b16 %v1202, %v1200
        %v1591 = vpack.c.b16 %v1203, %v1201
        %v1592 = vpack.c.b16 %v1206, %v1204
        %v1593 = vpack.c.b16 %v1207, %v1205
        %v1594 = vpack.c.b16 %v1210, %v1208
        %v1595 = vpack.c.b16 %v1211, %v1209
        %v1596 = vpack.c.b16 %v1214, %v1212
        %v1597 = vpack.c.b16 %v1215, %v1213
        %v1598 = vpack.c.b16 %v1218, %v1216
        %v1599 = vpack.c.b16 %v1219, %v1217
        %v1600 = vpack.c.b16 %v1222, %v1220
        %v1601 = vpack.c.b16 %v1223, %v1221
        %v1602 = vpack.c.b16 %v1226, %v1224
        %v1603 = vpack.c.b16 %v1227, %v1225
        %v1604 = vpack.c.b16 %v1230, %v1228
        %v1605 = vpack.c.b16 %v1231, %v1229
        %v1606 = vpack.c.b16 %v1234, %v1232
        %v1607 = vpack.c.b16 %v1235, %v1233
        %v1608 = vpack.c.b16 %v1238, %v1236
        %v1609 = vpack.c.b16 %v1239, %v1237
        %v1610 = vpack.c.b16 %v1242, %v1240
        %v1611 = vpack.c.b16 %v1243, %v1241
        %v1612 = vpack.c.b16 %v1246, %v1244
        %v1613 = vpack.c.b16 %v1247, %v1245
        %v1614 = vpack.c.b16 %v1250, %v1248
        %v1615 = vpack.c.b16 %v1251, %v1249
        %v1616 = vpack.c.b16 %v1254, %v1252
        %v1617 = vpack.c.b16 %v1255, %v1253
        %v1618 = vpack.c.b16 %v1258, %v1256
        %v1619 = vpack.c.b16 %v1259, %v1257
        %v1620 = vpack.c.b16 %v1262, %v1260
        %v1621 = vpack.c.b16 %v1263, %v1261
        %v1622 = vpack.c.b16 %v1266, %v1264
        %v1623 = vpack.c.b16 %v1267, %v1265
        %v1624 = vpack.c.b16 %v1270, %v1268
        %v1625 = vpack.c.b16 %v1271, %v1269
        %v1626 = vpack.c.b16 %v1274, %v1272
        %v1627 = vpack.c.b16 %v1275, %v1273
        %v1628 = vpack.c.b16 %v1278, %v1276
        %v1629 = vpack.c.b16 %v1279, %v1277
        %v1630 = vpack.c.b16 %v1282, %v1280
        %v1631 = vpack.c.b16 %v1283, %v1281
        %v1632 = vpack.c.b16 %v1286, %v1284
        %v1633 = vpack.c.b16 %v1287, %v1285
        %v1634 = vpack.c.b16 %v1290, %v1288
        %v1635 = vpack.c.b16 %v1291, %v1289
        %v1636 = vpack.c.b16 %v1294, %v1292
        %v1637 = vpack.c.b16 %v1295, %v1293
        %v1638 = vpack.c.b16 %v1298, %v1296
        %v1639 = vpack.c.b16 %v1299, %v1297
        %v1640 = vpack.c.b16 %v1302, %v1300
        %v1641 = vpack.c.b16 %v1303, %v1301
        %v1642 = vpack.c.b16 %v1306, %v1304
        %v1643 = vpack.c.b16 %v1307, %v1305
        %v1644 = vpack.c.b16 %v1310, %v1308
        %v1645 = vpack.c.b16 %v1311, %v1309
        %v1646 = vpack.c.b16 %v1314, %v1312
        %v1647 = vpack.c.b16 %v1315, %v1313
        %v1648 = vpack.c.b16 %v1318, %v1316
        %v1649 = vpack.c.b16 %v1319, %v1317
        %v1650 = vpack.c.b16 %v1322, %v1320
        %v1651 = vpack.c.b16 %v1323, %v1321
        %v1652 = vpack.c.b16 %v1326, %v1324
        %v1653 = vpack.c.b16 %v1327, %v1325
        %v1654 = vpack.c.b16 %v1330, %v1328
        %v1655 = vpack.c.b16 %v1331, %v1329
        %v1656 = vpack.c.b16 %v1334, %v1332
        %v1657 = vpack.c.b16 %v1335, %v1333
        %v1658 = vpack.c.b16 %v1338, %v1336
        %v1659 = vpack.c.b16 %v1339, %v1337
        %v1660 = vpack.c.b16 %v1342, %v1340
        %v1661 = vpack.c.b16 %v1343, %v1341
        %v1662 = vpack.c.b16 %v1346, %v1344
        %v1663 = vpack.c.b16 %v1347, %v1345
        %v1664 = vpack.c.b16 %v1350, %v1348
        %v1665 = vpack.c.b16 %v1351, %v1349
        %v1666 = vpack.c.b16 %v1354, %v1352
        %v1667 = vpack.c.b16 %v1355, %v1353
        %v1668 = vpack.c.b16 %v1358, %v1356
        %v1669 = vpack.c.b16 %v1359, %v1357
        %v1670 = vpack.c.b16 %v1362, %v1360
        %v1671 = vpack.c.b16 %v1363, %v1361
        %v1672 = vpack.c.b16 %v1366, %v1364
        %v1673 = vpack.c.b16 %v1367, %v1365
        %v1674 = vpack.c.b16 %v1370, %v1368
        %v1675 = vpack.c.b16 %v1371, %v1369
        %v1676 = vpack.c.b16 %v1374, %v1372
        %v1677 = vpack.c.b16 %v1375, %v1373
        %v1678 = vpack.c.b16 %v1378, %v1376
        %v1679 = vpack.c.b16 %v1379, %v1377
        %v1680 = vpack.c.b16 %v1382, %v1380
        %v1681 = vpack.c.b16 %v1383, %v1381
        %v1682 = vpack.c.b16 %v1386, %v1384
        %v1683 = vpack.c.b16 %v1387, %v1385
        %v1684 = vpack.c.b16 %v1390, %v1388
        %v1685 = vpack.c.b16 %v1391, %v1389
        %v1686 = vpack.c.b16 %v1394, %v1392
        %v1687 = vpack.c.b16 %v1395, %v1393
        %v1688 = vpack.c.b16 %v1398, %v1396
        %v1689 = vpack.c.b16 %v1399, %v1397
        %v1690 = vpack.c.b16 %v1402, %v1400
        %v1691 = vpack.c.b16 %v1403, %v1401
        %v1692 = vpack.c.b16 %v1406, %v1404
        %v1693 = vpack.c.b16 %v1407, %v1405
        %v1694 = vpack.c.b16 %v1410, %v1408
        %v1695 = vpack.c.b16 %v1411, %v1409
        %v1696 = vpack.c.b16 %v1414, %v1412
        %v1697 = vpack.c.b16 %v1415, %v1413
        %v1698 = vpack.c.b16 %v1418, %v1416
        %v1699 = vpack.c.b16 %v1419, %v1417
        %v1700 = vpack.c.b16 %v1422, %v1420
        %v1701 = vpack.c.b16 %v1423, %v1421
        %v1702 = vpack.c.b16 %v1426, %v1424
        %v1703 = vpack.c.b16 %v1427, %v1425
        %v1704 = vpack.c.b16 %v1430, %v1428
        %v1705 = vpack.c.b16 %v1431, %v1429
        %v1706 = vpack.c.b16 %v1434, %v1432
        %v1707 = vpack.c.b16 %v1435, %v1433
        %v1708 = vpack.c.b16 %v1438, %v1436
        %v1709 = vpack.c.b16 %v1439, %v1437
        %v1710 = vpack.c.b16 %v1442, %v1440
        %v1711 = vpack.c.b16 %v1443, %v1441
        %v1712 = vpack.c.b16 %v1446, %v1444
        %v1713 = vpack.c.b16 %v1447, %v1445
        %v1714 = vpack.c.b16 %v1450, %v1448
        %v1715 = vpack.c.b16 %v1451, %v1449
        %v1716 = vpack.c.b16 %v1454, %v1452
        %v1717 = vpack.c.b16 %v1455, %v1453
        %v1718 = vpack.c.b16 %v1458, %v1456
        %v1719 = vpack.c.b16 %v1459, %v1457
        %v1720 = vpack.c.b16 %v1462, %v1460
        %v1721 = vpack.c.b16 %v1463, %v1461
        %v1722 = vpack.c.b16 %v1466, %v1464
        %v1723 = vpack.c.b16 %v1467, %v1465
        %1980 = vmatprep.subr.bf16.mxu0 %v1483
        %1981 = vmatpush1.bf16.msra.mxu0 %v1482
        %1982 = vmatprep.subr.bf16.mxu0 %v1481
        %1983 = vmatpush1.bf16.msra.mxu0 %v1480
        %1984 = vmatprep.subr.bf16.mxu0 %v1479
        %1985 = vmatpush1.bf16.msra.mxu0 %v1478
        %1986 = vmatprep.subr.bf16.mxu0 %v1477
        %1987 = vmatpush1.bf16.msra.mxu0 %v1476
        %1988 = vmatprep.subr.bf16.mxu0 %v1475
        %1989 = vmatpush1.bf16.msra.mxu0 %v1474
        %1990 = vmatprep.subr.bf16.mxu0 %v1473
        %1991 = vmatpush1.bf16.msra.mxu0 %v1472
        %1992 = vmatprep.subr.bf16.mxu0 %v1471
        %1993 = vmatpush1.bf16.msra.mxu0 %v1470
        %1994 = vmatprep.subr.bf16.mxu0 %v1469
        %1995 = vmatpush1.bf16.msra.mxu0 %v1468
        %1996 = vmatprep.subr.bf16.mxu0 %v1499
        %1997 = vmatpush2.bf16.msra.mxu0 %v1498
        %1998 = vmatprep.subr.bf16.mxu0 %v1497
        %1999 = vmatpush2.bf16.msra.mxu0 %v1496
        %2000 = vmatprep.subr.bf16.mxu0 %v1495
        %2001 = vmatpush2.bf16.msra.mxu0 %v1494
        %2002 = vmatprep.subr.bf16.mxu0 %v1493
        %2003 = vmatpush2.bf16.msra.mxu0 %v1492
        %2004 = vmatprep.subr.bf16.mxu0 %v1491
        %2005 = vmatpush2.bf16.msra.mxu0 %v1490
        %2006 = vmatprep.subr.bf16.mxu0 %v1489
        %2007 = vmatpush2.bf16.msra.mxu0 %v1488
        %2008 = vmatprep.subr.bf16.mxu0 %v1487
        %2009 = vmatpush2.bf16.msra.mxu0 %v1486
        %2010 = vmatprep.subr.bf16.mxu0 %v1485
        %2011 = vmatpush2.bf16.msra.mxu0 %v1484
        %2012 = vmatprep.mubr.bf16.mxu0 %v631
        %2013 = vmatmul.mubr.bf16.gmra.mxu0 %v623
        %v2014 = vpop.f32.mrf.mxu0
        %v2015 = vadd.f32 %v605, %v2014
        %v2016 = vpop.f32.mrf.mxu0
        %v2017 = vadd.f32 %v609, %v2016
        %v2018 = vpop.f32.mrf.mxu0
        %v2019 = vpop.f32.mrf.mxu0
        %2020 = vdwg.mxu0
        %2021 = vmatprep.subr.bf16.mxu0 %v1515
        %2022 = vmatpush1.bf16.msra.mxu0 %v1514
        %2023 = vmatprep.subr.bf16.mxu0 %v1513
        %2024 = vmatpush1.bf16.msra.mxu0 %v1512
        %2025 = vmatprep.subr.bf16.mxu0 %v1511
        %2026 = vmatpush1.bf16.msra.mxu0 %v1510
        %2027 = vmatprep.subr.bf16.mxu0 %v1509
        %2028 = vmatpush1.bf16.msra.mxu0 %v1508
        %2029 = vmatprep.subr.bf16.mxu0 %v1507
        %2030 = vmatpush1.bf16.msra.mxu0 %v1506
        %2031 = vmatprep.subr.bf16.mxu0 %v1505
        %2032 = vmatpush1.bf16.msra.mxu0 %v1504
        %2033 = vmatprep.subr.bf16.mxu0 %v1503
        %2034 = vmatpush1.bf16.msra.mxu0 %v1502
        %2035 = vmatprep.subr.bf16.mxu0 %v1501
        %2036 = vmatpush1.bf16.msra.mxu0 %v1500
        %2037 = vmatprep.subr.bf16.mxu0 %v1531
        %2038 = vmatpush2.bf16.msra.mxu0 %v1530
        %2039 = vmatprep.subr.bf16.mxu0 %v1529
        %2040 = vmatpush2.bf16.msra.mxu0 %v1528
        %2041 = vmatprep.subr.bf16.mxu0 %v1527
        %2042 = vmatpush2.bf16.msra.mxu0 %v1526
        %2043 = vmatprep.subr.bf16.mxu0 %v1525
        %2044 = vmatpush2.bf16.msra.mxu0 %v1524
        %2045 = vmatprep.subr.bf16.mxu0 %v1523
        %2046 = vmatpush2.bf16.msra.mxu0 %v1522
        %2047 = vmatprep.subr.bf16.mxu0 %v1521
        %2048 = vmatpush2.bf16.msra.mxu0 %v1520
        %2049 = vmatprep.subr.bf16.mxu0 %v1519
        %2050 = vmatpush2.bf16.msra.mxu0 %v1518
        %2051 = vmatprep.subr.bf16.mxu0 %v1517
        %2052 = vmatpush2.bf16.msra.mxu0 %v1516
        %2053 = vmatprep.mubr.bf16.mxu0 %v632
        %2054 = vmatmul.mubr.bf16.gmra.mxu0 %v630
        %v2055 = vpop.f32.mrf.mxu0
        %v2056 = vadd.f32 %v2015, %v2055
        %v2057 = vpop.f32.mrf.mxu0
        %v2058 = vadd.f32 %v2017, %v2057
        %v2059 = vpop.f32.mrf.mxu0
        %v2060 = vpop.f32.mrf.mxu0
        %2061 = vdwg.mxu0
        %2062 = vmatprep.subr.bf16.mxu0 %v1547
        %2063 = vmatpush1.bf16.msra.mxu0 %v1546
        %2064 = vmatprep.subr.bf16.mxu0 %v1545
        %2065 = vmatpush1.bf16.msra.mxu0 %v1544
        %2066 = vmatprep.subr.bf16.mxu0 %v1543
        %2067 = vmatpush1.bf16.msra.mxu0 %v1542
        %2068 = vmatprep.subr.bf16.mxu0 %v1541
        %2069 = vmatpush1.bf16.msra.mxu0 %v1540
        %2070 = vmatprep.subr.bf16.mxu0 %v1539
        %2071 = vmatpush1.bf16.msra.mxu0 %v1538
        %2072 = vmatprep.subr.bf16.mxu0 %v1537
        %2073 = vmatpush1.bf16.msra.mxu0 %v1536
        %2074 = vmatprep.subr.bf16.mxu0 %v1535
        %2075 = vmatpush1.bf16.msra.mxu0 %v1534
        %2076 = vmatprep.subr.bf16.mxu0 %v1533
        %2077 = vmatpush1.bf16.msra.mxu0 %v1532
        %2078 = vmatprep.subr.bf16.mxu0 %v1563
        %2079 = vmatpush2.bf16.msra.mxu0 %v1562
        %2080 = vmatprep.subr.bf16.mxu0 %v1561
        %2081 = vmatpush2.bf16.msra.mxu0 %v1560
        %2082 = vmatprep.subr.bf16.mxu0 %v1559
        %2083 = vmatpush2.bf16.msra.mxu0 %v1558
        %2084 = vmatprep.subr.bf16.mxu0 %v1557
        %2085 = vmatpush2.bf16.msra.mxu0 %v1556
        %2086 = vmatprep.subr.bf16.mxu0 %v1555
        %2087 = vmatpush2.bf16.msra.mxu0 %v1554
        %2088 = vmatprep.subr.bf16.mxu0 %v1553
        %2089 = vmatpush2.bf16.msra.mxu0 %v1552
        %2090 = vmatprep.subr.bf16.mxu0 %v1551
        %2091 = vmatpush2.bf16.msra.mxu0 %v1550
        %2092 = vmatprep.subr.bf16.mxu0 %v1549
        %2093 = vmatpush2.bf16.msra.mxu0 %v1548
        %2094 = vmatprep.mubr.bf16.mxu0 %v648
        %2095 = vmatmul.mubr.bf16.gmra.mxu0 %v640
        %v2096 = vpop.f32.mrf.mxu0
        %v2097 = vadd.f32 %v2056, %v2096
        %v2098 = vpop.f32.mrf.mxu0
        %v2099 = vadd.f32 %v2058, %v2098
        %v2100 = vpop.f32.mrf.mxu0
        %v2101 = vpop.f32.mrf.mxu0
        %2102 = vdwg.mxu0
        %2103 = vmatprep.subr.bf16.mxu0 %v1579
        %2104 = vmatpush1.bf16.msra.mxu0 %v1578
        %2105 = vmatprep.subr.bf16.mxu0 %v1577
        %2106 = vmatpush1.bf16.msra.mxu0 %v1576
        %2107 = vmatprep.subr.bf16.mxu0 %v1575
        %2108 = vmatpush1.bf16.msra.mxu0 %v1574
        %2109 = vmatprep.subr.bf16.mxu0 %v1573
        %2110 = vmatpush1.bf16.msra.mxu0 %v1572
        %2111 = vmatprep.subr.bf16.mxu0 %v1571
        %2112 = vmatpush1.bf16.msra.mxu0 %v1570
        %2113 = vmatprep.subr.bf16.mxu0 %v1569
        %2114 = vmatpush1.bf16.msra.mxu0 %v1568
        %2115 = vmatprep.subr.bf16.mxu0 %v1567
        %2116 = vmatpush1.bf16.msra.mxu0 %v1566
        %2117 = vmatprep.subr.bf16.mxu0 %v1565
        %2118 = vmatpush1.bf16.msra.mxu0 %v1564
        %2119 = vmatprep.subr.bf16.mxu0 %v1595
        %2120 = vmatpush2.bf16.msra.mxu0 %v1594
        %2121 = vmatprep.subr.bf16.mxu0 %v1593
        %2122 = vmatpush2.bf16.msra.mxu0 %v1592
        %2123 = vmatprep.subr.bf16.mxu0 %v1591
        %2124 = vmatpush2.bf16.msra.mxu0 %v1590
        %2125 = vmatprep.subr.bf16.mxu0 %v1589
        %2126 = vmatpush2.bf16.msra.mxu0 %v1588
        %2127 = vmatprep.subr.bf16.mxu0 %v1587
        %2128 = vmatpush2.bf16.msra.mxu0 %v1586
        %2129 = vmatprep.subr.bf16.mxu0 %v1585
        %2130 = vmatpush2.bf16.msra.mxu0 %v1584
        %2131 = vmatprep.subr.bf16.mxu0 %v1583
        %2132 = vmatpush2.bf16.msra.mxu0 %v1582
        %2133 = vmatprep.subr.bf16.mxu0 %v1581
        %2134 = vmatpush2.bf16.msra.mxu0 %v1580
        %2135 = vmatprep.mubr.bf16.mxu0 %v649
        %2136 = vmatmul.mubr.bf16.gmra.mxu0 %v647
        %v2137 = vpop.f32.mrf.mxu0
        %v2138 = vadd.f32 %v2097, %v2137
        %v2139 = vpop.f32.mrf.mxu0
        %v2140 = vadd.f32 %v2099, %v2139
        %v2141 = vpop.f32.mrf.mxu0
        %v2142 = vpop.f32.mrf.mxu0
        %2143 = vdwg.mxu0
        %2144 = vmatprep.subr.bf16.mxu0 %v1611
        %2145 = vmatpush1.bf16.msra.mxu0 %v1610
        %2146 = vmatprep.subr.bf16.mxu0 %v1609
        %2147 = vmatpush1.bf16.msra.mxu0 %v1608
        %2148 = vmatprep.subr.bf16.mxu0 %v1607
        %2149 = vmatpush1.bf16.msra.mxu0 %v1606
        %2150 = vmatprep.subr.bf16.mxu0 %v1605
        %2151 = vmatpush1.bf16.msra.mxu0 %v1604
        %2152 = vmatprep.subr.bf16.mxu0 %v1603
        %2153 = vmatpush1.bf16.msra.mxu0 %v1602
        %2154 = vmatprep.subr.bf16.mxu0 %v1601
        %2155 = vmatpush1.bf16.msra.mxu0 %v1600
        %2156 = vmatprep.subr.bf16.mxu0 %v1599
        %2157 = vmatpush1.bf16.msra.mxu0 %v1598
        %2158 = vmatprep.subr.bf16.mxu0 %v1597
        %2159 = vmatpush1.bf16.msra.mxu0 %v1596
        %2160 = vmatprep.subr.bf16.mxu0 %v1627
        %2161 = vmatpush2.bf16.msra.mxu0 %v1626
        %2162 = vmatprep.subr.bf16.mxu0 %v1625
        %2163 = vmatpush2.bf16.msra.mxu0 %v1624
        %2164 = vmatprep.subr.bf16.mxu0 %v1623
        %2165 = vmatpush2.bf16.msra.mxu0 %v1622
        %2166 = vmatprep.subr.bf16.mxu0 %v1621
        %2167 = vmatpush2.bf16.msra.mxu0 %v1620
        %2168 = vmatprep.subr.bf16.mxu0 %v1619
        %2169 = vmatpush2.bf16.msra.mxu0 %v1618
        %2170 = vmatprep.subr.bf16.mxu0 %v1617
        %2171 = vmatpush2.bf16.msra.mxu0 %v1616
        %2172 = vmatprep.subr.bf16.mxu0 %v1615
        %2173 = vmatpush2.bf16.msra.mxu0 %v1614
        %2174 = vmatprep.subr.bf16.mxu0 %v1613
        %2175 = vmatpush2.bf16.msra.mxu0 %v1612
        %2176 = vmatprep.mubr.bf16.mxu0 %v665
        %2177 = vmatmul.mubr.bf16.gmra.mxu0 %v657
        %v2178 = vpop.f32.mrf.mxu0
        %v2179 = vadd.f32 %v2138, %v2178
        %v2180 = vpop.f32.mrf.mxu0
        %v2181 = vadd.f32 %v2140, %v2180
        %v2182 = vpop.f32.mrf.mxu0
        %v2183 = vpop.f32.mrf.mxu0
        %2184 = vdwg.mxu0
        %2185 = vmatprep.subr.bf16.mxu0 %v1643
        %2186 = vmatpush1.bf16.msra.mxu0 %v1642
        %2187 = vmatprep.subr.bf16.mxu0 %v1641
        %2188 = vmatpush1.bf16.msra.mxu0 %v1640
        %2189 = vmatprep.subr.bf16.mxu0 %v1639
        %2190 = vmatpush1.bf16.msra.mxu0 %v1638
        %2191 = vmatprep.subr.bf16.mxu0 %v1637
        %2192 = vmatpush1.bf16.msra.mxu0 %v1636
        %2193 = vmatprep.subr.bf16.mxu0 %v1635
        %2194 = vmatpush1.bf16.msra.mxu0 %v1634
        %2195 = vmatprep.subr.bf16.mxu0 %v1633
        %2196 = vmatpush1.bf16.msra.mxu0 %v1632
        %2197 = vmatprep.subr.bf16.mxu0 %v1631
        %2198 = vmatpush1.bf16.msra.mxu0 %v1630
        %2199 = vmatprep.subr.bf16.mxu0 %v1629
        %2200 = vmatpush1.bf16.msra.mxu0 %v1628
        %2201 = vmatprep.subr.bf16.mxu0 %v1659
        %2202 = vmatpush2.bf16.msra.mxu0 %v1658
        %2203 = vmatprep.subr.bf16.mxu0 %v1657
        %2204 = vmatpush2.bf16.msra.mxu0 %v1656
        %2205 = vmatprep.subr.bf16.mxu0 %v1655
        %2206 = vmatpush2.bf16.msra.mxu0 %v1654
        %2207 = vmatprep.subr.bf16.mxu0 %v1653
        %2208 = vmatpush2.bf16.msra.mxu0 %v1652
        %2209 = vmatprep.subr.bf16.mxu0 %v1651
        %2210 = vmatpush2.bf16.msra.mxu0 %v1650
        %2211 = vmatprep.subr.bf16.mxu0 %v1649
        %2212 = vmatpush2.bf16.msra.mxu0 %v1648
        %2213 = vmatprep.subr.bf16.mxu0 %v1647
        %2214 = vmatpush2.bf16.msra.mxu0 %v1646
        %2215 = vmatprep.subr.bf16.mxu0 %v1645
        %2216 = vmatpush2.bf16.msra.mxu0 %v1644
        %2217 = vmatprep.mubr.bf16.mxu0 %v666
        %2218 = vmatmul.mubr.bf16.gmra.mxu0 %v664
        %v2219 = vpop.f32.mrf.mxu0
        %v2220 = vadd.f32 %v2179, %v2219
        %v2221 = vpop.f32.mrf.mxu0
        %v2222 = vadd.f32 %v2181, %v2221
        %v2223 = vpop.f32.mrf.mxu0
        %v2224 = vpop.f32.mrf.mxu0
        %2225 = vdwg.mxu0
        %2226 = vmatprep.subr.bf16.mxu0 %v1675
        %2227 = vmatpush1.bf16.msra.mxu0 %v1674
        %2228 = vmatprep.subr.bf16.mxu0 %v1673
        %2229 = vmatpush1.bf16.msra.mxu0 %v1672
        %2230 = vmatprep.subr.bf16.mxu0 %v1671
        %2231 = vmatpush1.bf16.msra.mxu0 %v1670
        %2232 = vmatprep.subr.bf16.mxu0 %v1669
        %2233 = vmatpush1.bf16.msra.mxu0 %v1668
        %2234 = vmatprep.subr.bf16.mxu0 %v1667
        %2235 = vmatpush1.bf16.msra.mxu0 %v1666
        %2236 = vmatprep.subr.bf16.mxu0 %v1665
        %2237 = vmatpush1.bf16.msra.mxu0 %v1664
        %2238 = vmatprep.subr.bf16.mxu0 %v1663
        %2239 = vmatpush1.bf16.msra.mxu0 %v1662
        %2240 = vmatprep.subr.bf16.mxu0 %v1661
        %2241 = vmatpush1.bf16.msra.mxu0 %v1660
        %2242 = vmatprep.subr.bf16.mxu0 %v1691
        %2243 = vmatpush2.bf16.msra.mxu0 %v1690
        %2244 = vmatprep.subr.bf16.mxu0 %v1689
        %2245 = vmatpush2.bf16.msra.mxu0 %v1688
        %2246 = vmatprep.subr.bf16.mxu0 %v1687
        %2247 = vmatpush2.bf16.msra.mxu0 %v1686
        %2248 = vmatprep.subr.bf16.mxu0 %v1685
        %2249 = vmatpush2.bf16.msra.mxu0 %v1684
        %2250 = vmatprep.subr.bf16.mxu0 %v1683
        %2251 = vmatpush2.bf16.msra.mxu0 %v1682
        %2252 = vmatprep.subr.bf16.mxu0 %v1681
        %2253 = vmatpush2.bf16.msra.mxu0 %v1680
        %2254 = vmatprep.subr.bf16.mxu0 %v1679
        %2255 = vmatpush2.bf16.msra.mxu0 %v1678
        %2256 = vmatprep.subr.bf16.mxu0 %v1677
        %2257 = vmatpush2.bf16.msra.mxu0 %v1676
        %2258 = vmatprep.mubr.bf16.mxu0 %v682
        %2259 = vmatmul.mubr.bf16.gmra.mxu0 %v674
        %v2260 = vpop.f32.mrf.mxu0
        %v2261 = vadd.f32 %v2220, %v2260
        %v2262 = vpop.f32.mrf.mxu0
        %v2263 = vadd.f32 %v2222, %v2262
        %v2264 = vpop.f32.mrf.mxu0
        %v2265 = vpop.f32.mrf.mxu0
        %2266 = vdwg.mxu0
        %2267 = vmatprep.subr.bf16.mxu0 %v1707
        %2268 = vmatpush1.bf16.msra.mxu0 %v1706
        %2269 = vmatprep.subr.bf16.mxu0 %v1705
        %2270 = vmatpush1.bf16.msra.mxu0 %v1704
        %2271 = vmatprep.subr.bf16.mxu0 %v1703
        %2272 = vmatpush1.bf16.msra.mxu0 %v1702
        %2273 = vmatprep.subr.bf16.mxu0 %v1701
        %2274 = vmatpush1.bf16.msra.mxu0 %v1700
        %2275 = vmatprep.subr.bf16.mxu0 %v1699
        %2276 = vmatpush1.bf16.msra.mxu0 %v1698
        %2277 = vmatprep.subr.bf16.mxu0 %v1697
        %2278 = vmatpush1.bf16.msra.mxu0 %v1696
        %2279 = vmatprep.subr.bf16.mxu0 %v1695
        %2280 = vmatpush1.bf16.msra.mxu0 %v1694
        %2281 = vmatprep.subr.bf16.mxu0 %v1693
        %2282 = vmatpush1.bf16.msra.mxu0 %v1692
        %2283 = vmatprep.subr.bf16.mxu0 %v1723
        %2284 = vmatpush2.bf16.msra.mxu0 %v1722
        %2285 = vmatprep.subr.bf16.mxu0 %v1721
        %2286 = vmatpush2.bf16.msra.mxu0 %v1720
        %2287 = vmatprep.subr.bf16.mxu0 %v1719
        %2288 = vmatpush2.bf16.msra.mxu0 %v1718
        %2289 = vmatprep.subr.bf16.mxu0 %v1717
        %2290 = vmatpush2.bf16.msra.mxu0 %v1716
        %2291 = vmatprep.subr.bf16.mxu0 %v1715
        %2292 = vmatpush2.bf16.msra.mxu0 %v1714
        %2293 = vmatprep.subr.bf16.mxu0 %v1713
        %2294 = vmatpush2.bf16.msra.mxu0 %v1712
        %2295 = vmatprep.subr.bf16.mxu0 %v1711
        %2296 = vmatpush2.bf16.msra.mxu0 %v1710
        %2297 = vmatprep.subr.bf16.mxu0 %v1709
        %2298 = vmatpush2.bf16.msra.mxu0 %v1708
        %2299 = vmatprep.mubr.bf16.mxu0 %v683
        %2300 = vmatmul.mubr.bf16.gmra.mxu0 %v681
        %v2301 = vpop.f32.mrf.mxu0
        %v2302 = vadd.f32 %v2261, %v2301
        %v2303 = vpop.f32.mrf.mxu0
        %v2304 = vadd.f32 %v2263, %v2303
        %v2305 = vpop.f32.mrf.mxu0
        %v2306 = vpop.f32.mrf.mxu0
        %2307 = vdwg.mxu0
        %v2308 = vmax.f32 %v2302, 0.0
        %v2309 = vmax.f32 %v2304, 0.0
        %v2310 = vld [vmem:[#allocation2] sm:$0xf]
        %v2311 = vpack.c.bf16 %v2308, %v2308
        %v2312 = vpack.c.bf16 %v2309, %v2309
        %v2313 = vld [vmem:[%s295] sm:$0xf]
        %v2314 = vld [vmem:[%s295 + $0x4] sm:$0xf]
        %v2315 = vld [vmem:[%s295 + $0x8] sm:$0xf]
        %v2316 = vld [vmem:[%s295 + $0xc] sm:$0xf]
        %v2317 = vld [vmem:[%s295 + $0x10] sm:$0xf]
        %v2318 = vld [vmem:[%s295 + $0x14] sm:$0xf]
        %v2319 = vld [vmem:[%s295 + $0x18] sm:$0xf]
        %v2320 = vld [vmem:[%s295 + $0x1c] sm:$0xf]
        %v2321 = vld [vmem:[%s295 + $0x20] sm:$0xf]
        %v2322 = vld [vmem:[%s295 + $0x24] sm:$0xf]
        %v2323 = vld [vmem:[%s295 + $0x28] sm:$0xf]
        %v2324 = vld [vmem:[%s295 + $0x2c] sm:$0xf]
        %v2325 = vld [vmem:[%s295 + $0x30] sm:$0xf]
        %v2326 = vld [vmem:[%s295 + $0x34] sm:$0xf]
        %v2327 = vld [vmem:[%s295 + $0x38] sm:$0xf]
        %v2328 = vld [vmem:[%s295 + $0x3c] sm:$0xf]
        %v2329 = vld [vmem:[%s295 + $0x40] sm:$0xf]
        %v2330 = vld [vmem:[%s295 + $0x44] sm:$0xf]
        %v2331 = vld [vmem:[%s295 + $0x48] sm:$0xf]
        %v2332 = vld [vmem:[%s295 + $0x4c] sm:$0xf]
        %v2333 = vld [vmem:[%s295 + $0x50] sm:$0xf]
        %v2334 = vld [vmem:[%s295 + $0x54] sm:$0xf]
        %v2335 = vld [vmem:[%s295 + $0x58] sm:$0xf]
        %v2336 = vld [vmem:[%s295 + $0x5c] sm:$0xf]
        %v2337 = vld [vmem:[%s295 + $0x60] sm:$0xf]
        %v2338 = vld [vmem:[%s295 + $0x64] sm:$0xf]
        %v2339 = vld [vmem:[%s295 + $0x68] sm:$0xf]
        %v2340 = vld [vmem:[%s295 + $0x6c] sm:$0xf]
        %v2341 = vld [vmem:[%s295 + $0x70] sm:$0xf]
        %v2342 = vld [vmem:[%s295 + $0x74] sm:$0xf]
        %v2343 = vld [vmem:[%s295 + $0x78] sm:$0xf]
        %v2344 = vld [vmem:[%s295 + $0x7c] sm:$0xf]
        %v2377 = vunpack.c.l.b16 %v2313
        %v2378 = vunpack.c.l.b16 %v2314
        %v2379 = vunpack.c.l.b16 %v2315
        %v2380 = vunpack.c.l.b16 %v2316
        %v2381 = vunpack.c.l.b16 %v2317
        %v2382 = vunpack.c.l.b16 %v2318
        %v2383 = vunpack.c.l.b16 %v2319
        %v2384 = vunpack.c.l.b16 %v2320
        %v2385 = vunpack.c.l.b16 %v2321
        %v2386 = vunpack.c.l.b16 %v2322
        %v2387 = vunpack.c.l.b16 %v2323
        %v2388 = vunpack.c.l.b16 %v2324
        %v2389 = vunpack.c.l.b16 %v2325
        %v2390 = vunpack.c.l.b16 %v2326
        %v2391 = vunpack.c.l.b16 %v2327
        %v2392 = vunpack.c.l.b16 %v2328
        %v2393 = vunpack.c.l.b16 %v2329
        %v2394 = vunpack.c.l.b16 %v2330
        %v2395 = vunpack.c.l.b16 %v2331
        %v2396 = vunpack.c.l.b16 %v2332
        %v2397 = vunpack.c.l.b16 %v2333
        %v2398 = vunpack.c.l.b16 %v2334
        %v2399 = vunpack.c.l.b16 %v2335
        %v2400 = vunpack.c.l.b16 %v2336
        %v2401 = vunpack.c.l.b16 %v2337
        %v2402 = vunpack.c.l.b16 %v2338
        %v2403 = vunpack.c.l.b16 %v2339
        %v2404 = vunpack.c.l.b16 %v2340
        %v2405 = vunpack.c.l.b16 %v2341
        %v2406 = vunpack.c.l.b16 %v2342
        %v2407 = vunpack.c.l.b16 %v2343
        %v2408 = vunpack.c.l.b16 %v2344
        %v2409 = vpack.c.b16 %v2378, %v2377
        %v2410 = vpack.c.b16 %v2380, %v2379
        %v2411 = vpack.c.b16 %v2382, %v2381
        %v2412 = vpack.c.b16 %v2384, %v2383
        %v2413 = vpack.c.b16 %v2386, %v2385
        %v2414 = vpack.c.b16 %v2388, %v2387
        %v2415 = vpack.c.b16 %v2390, %v2389
        %v2416 = vpack.c.b16 %v2392, %v2391
        %v2417 = vpack.c.b16 %v2394, %v2393
        %v2418 = vpack.c.b16 %v2396, %v2395
        %v2419 = vpack.c.b16 %v2398, %v2397
        %v2420 = vpack.c.b16 %v2400, %v2399
        %v2421 = vpack.c.b16 %v2402, %v2401
        %v2422 = vpack.c.b16 %v2404, %v2403
        %v2423 = vpack.c.b16 %v2406, %v2405
        %v2424 = vpack.c.b16 %v2408, %v2407
        %2441 = vmatprep.subr.bf16.mxu0 0
        %2442 = vmatpush1.bf16.msra.mxu0 %v2416
        %2443 = vmatprep.subr.bf16.mxu0 0
        %2444 = vmatpush1.bf16.msra.mxu0 %v2415
        %2445 = vmatprep.subr.bf16.mxu0 0
        %2446 = vmatpush1.bf16.msra.mxu0 %v2414
        %2447 = vmatprep.subr.bf16.mxu0 0
        %2448 = vmatpush1.bf16.msra.mxu0 %v2413
        %2449 = vmatprep.subr.bf16.mxu0 0
        %2450 = vmatpush1.bf16.msra.mxu0 %v2412
        %2451 = vmatprep.subr.bf16.mxu0 0
        %2452 = vmatpush1.bf16.msra.mxu0 %v2411
        %2453 = vmatprep.subr.bf16.mxu0 0
        %2454 = vmatpush1.bf16.msra.mxu0 %v2410
        %2455 = vmatprep.subr.bf16.mxu0 0
        %2456 = vmatpush1.bf16.msra.mxu0 %v2409
        %2457 = vmatprep.subr.bf16.mxu0 0
        %2458 = vmatpush2.bf16.msra.mxu0 %v2424
        %2459 = vmatprep.subr.bf16.mxu0 0
        %2460 = vmatpush2.bf16.msra.mxu0 %v2423
        %2461 = vmatprep.subr.bf16.mxu0 0
        %2462 = vmatpush2.bf16.msra.mxu0 %v2422
        %2463 = vmatprep.subr.bf16.mxu0 0
        %2464 = vmatpush2.bf16.msra.mxu0 %v2421
        %2465 = vmatprep.subr.bf16.mxu0 0
        %2466 = vmatpush2.bf16.msra.mxu0 %v2420
        %2467 = vmatprep.subr.bf16.mxu0 0
        %2468 = vmatpush2.bf16.msra.mxu0 %v2419
        %2469 = vmatprep.subr.bf16.mxu0 0
        %2470 = vmatpush2.bf16.msra.mxu0 %v2418
        %2471 = vmatprep.subr.bf16.mxu0 0
        %2472 = vmatpush2.bf16.msra.mxu0 %v2417
        %2473 = vmatprep.mubr.bf16.mxu0 %v2312
        %2474 = vmatmul.mubr.bf16.gmra.mxu0 %v2311
        %v2475 = vpop.f32.mrf.mxu0
        %v2476 = vadd.f32 0.0, %v2475
        %v2477 = vpop.f32.mrf.mxu0
        %v2478 = vpop.f32.mrf.mxu0
        %v2479 = vpop.f32.mrf.mxu0
        %2480 = vdwg.mxu0
        %v2481 = vadd.f32 %v2310, %v2476
        %2482 = vst [vmem:[#allocation2] sm:$0xf] %v2481
        %p2483 = scmp.eq.s32.totalorder %s24, 3
        // Predicated region
        $region65: #{tpu_custom_call.1} parent=39 // pred_check
          %p2484 = pneg %p2483
        $region66: #{tpu_custom_call.1} parent=39 // pred_check_branch
          %2486 = sbr.rel (%p2484) target = $region68
        $region67: #{tpu_custom_call.1} parent=39 // pred_region
          %v2487 = vld [vmem:[#allocation2] sm:$0xf]
          %v2488 = vld [vmem:[#allocation11] sm:$0x1]
          %v2490 = vlaneseq
          %v2491 = vshrl.u32 %v2490, 7
          %v2492 = vsub.s32 0, %v2491
          %v2493 = vrot.slane %v2488, %v2492
          %v2495 = vadd.f32 %v2487, %v2493
          %v2496 = vsub.f32 0.0, %v2495
          %v2497 = vmul.f32 %v2496, 1.442695
          %v2498 = vpow.pop %v2497
          %v2499 = vadd.f32 %v2498, 1.0
          %v2500 = vrcp.pop %v2499
          %v2501 = vlaneseq
          %v2502 = vand.u32 %v2501, 127
          %vm2503 = vcmp.lt.s32.totalorder %v2502, 10
          %v2504 = vmul.f32 %v2500, 1.442695
          %v2505 = vpow.pop %v2504
          %v2506 = vsel %vm2503, %v2505, 0.0
          %vm2507 = vcmask 1043456
          %v2508 = vsel %vm2507, %v2506, 0.0
          %2509 = vadd.xlane.f32.xlu0 %v2508
          %v2510 = vpop.xlane.xlu0 %2509
          %v2511 = vrcp.pop %v2510
          %v2512 = vmul.f32 %v2506, %v2511
          %2513 = vst [vmem:[#allocation12] sm:$0xf] %v2512
        $region68: #{tpu_custom_call.1} parent=39 // pred_fallthru
          _
        // Predicated region
        $region69: #{tpu_custom_call.1} parent=39 // pred_check
          %p2514 = pneg %p157
        $region70: #{tpu_custom_call.1} parent=39 // pred_check_branch
          %2516 = sbr.rel (%p2514) target = $region72
        $region71: #{tpu_custom_call.1} parent=39 // pred_region
          %s2518 = ssub.s32 64, 64
          %2519 = vsyncadd [#allocation5], %s2518
          %s2521 = sshll.u32 [#allocation12], 4
          %s2522 = int_to_ptr.vmem [resolvable:$true] %s2521
          %2524 = dma.vmem_to_hbm [thread:$0]  %s2522, 64, %s5, [#allocation5]
        $region72: #{tpu_custom_call.1} parent=39 // pred_fallthru
          _
        // Predicated region
        $region73: #{tpu_custom_call.1} parent=39 // pred_check
          %p2525 = pneg %p157
        $region74: #{tpu_custom_call.1} parent=39 // pred_check_branch
          %2527 = sbr.rel (%p2525) target = $region76
        $region75: #{tpu_custom_call.1} parent=39 // pred_region
          %2528 = dma.done [#allocation5], 64
        $region76: #{tpu_custom_call.1} parent=39 // pred_fallthru
          _
      $region40: #{tpu_custom_call.1} parent=5 // pred_fallthru
        _
      %p2529 = scmp.le.s32.totalorder 2, %s19
      // Predicated region
      $region77: #{tpu_custom_call.1} parent=5 // pred_check
        %p2530 = pneg %p2529
      $region78: #{tpu_custom_call.1} parent=5 // pred_check_branch
        %2532 = sbr.rel (%p2530) target = $region80
      $region79: #{tpu_custom_call.1} parent=5 // pred_region
        %s2533 = ssub.s32 %s19, 2
      $region80: #{tpu_custom_call.1} parent=5 // pred_fallthru
        _
    $region6: #{tpu_custom_call.1} parent=1 // loop_footer
      %s23 = sadd.s32 1, %s19
    $region7: #{tpu_custom_call.1} parent=1 // loop_footer_branch
      %18 = sbr.rel target = $region3
    $region8: #{tpu_custom_call.1} parent=1 // loop_exit
      _
    %2534 = vsyncpa [#allocation4], 1
    %s2535 = scalar_lea.sflag [#allocation4], 1
    %2536 = vsyncpa %s2535, 1
    %2537 = vsyncpa [#allocation7], 1
    %s2538 = scalar_lea.sflag [#allocation7], 1
    %2539 = vsyncpa %s2538, 1
    %2540 = vsyncpa [#allocation10], 1
    %s2541 = scalar_lea.sflag [#allocation10], 1
    %2542 = vsyncpa %s2541, 1
    %2543 = vsyncpa [#allocation5], 1
    %s2544 = scalar_lea.sflag [#allocation5], 1
    %2545 = vsyncpa %s2544, 1

</llo_original>
